<compile_context>
chip_gen: v5e
topology: v5e:2x2
jax: 0.10.0
libtpu: 0.0.40
codegen_flags: <defaults>
</compile_context>

<pallas_src>
import math

import jax
import jax.numpy as jnp
from jax.experimental import pallas as pl
from jax.experimental.pallas import tpu as pltpu

# ---- tiny BERT config (synthetic) -------------------------------------------
VOCAB = 100
VOCAB_PAD = 104            # pad vocab rows to a sublane multiple for the in-kernel gather
HIDDEN = 32
N_HEADS = 4
HEAD_DIM = HIDDEN // N_HEADS
N_LAYERS = 2
INTERMEDIATE = 64
MAX_POS = 16
B = 2
S = 8
N_TOK = B * S
LN_EPS = 1e-12

# ---- packed "table" blob layout (row offsets; every row padded to TAB_COLS lanes) ----
TAB_COLS = 3 * HIDDEN                  # 96: widest row vector (qkv bias)
ROW_WORD = 0                           # [VOCAB_PAD, H] word embedding table
ROW_POSTYPE = VOCAB_PAD                # [N_TOK, H] position + token-type addend
ROW_EMB_G = ROW_POSTYPE + N_TOK
ROW_EMB_B = ROW_EMB_G + 1
ROW_LAYER0 = ROW_EMB_B + 1
ROWS_PER_LAYER = 8                     # bqkv, bo, ln1_g, ln1_b, b1, b2, ln2_g, ln2_b
TAB_ROWS = ROW_LAYER0 + N_LAYERS * ROWS_PER_LAYER

# ---- packed "matrix" blob layout (lane offsets), per layer: [H, MAT_COLS] ----
COL_WQKV = 0                           # [H, 3H]  (wq/sqrt(Dh) | wk | wv)
COL_WO = 3 * HIDDEN                    # [H, H]
COL_W1 = 4 * HIDDEN                    # [H, I]
COL_W2T = 4 * HIDDEN + INTERMEDIATE    # [H, I]  (w2 stored transposed)
MAT_COLS = 4 * HIDDEN + 2 * INTERMEDIATE


# ---- fused Pallas kernel -----------------------------------------------------
def _fused_encoder_kernel(ids_ref, bias_ref, mat_ref, tab_ref, cls_ref):
    def layernorm(y, g, b):
        mean = jnp.mean(y, axis=-1, keepdims=True)
        var = jnp.mean((y - mean) ** 2, axis=-1, keepdims=True)
        return (y - mean) * jax.lax.rsqrt(var + LN_EPS) * g + b

    # ---- in-kernel embedding lookup: one-hot(ids) @ word_table (single MXU pass) ----
    ids = ids_ref[...]                                                # [N_TOK, 1] int32
    onehot = ids == jax.lax.broadcasted_iota(jnp.int32, (N_TOK, VOCAB_PAD), 1)
    word_tab = tab_ref[ROW_WORD:ROW_WORD + VOCAB_PAD, 0:HIDDEN]       # [VOCAB_PAD, H]
    x = jnp.dot(onehot.astype(jnp.float32), word_tab,
                preferred_element_type=jnp.float32)                   # [N_TOK, H]
    x = x + tab_ref[ROW_POSTYPE:ROW_POSTYPE + N_TOK, 0:HIDDEN]        # + pos + type emb
    x = layernorm(x,
                  tab_ref[ROW_EMB_G:ROW_EMB_G + 1, 0:HIDDEN],
                  tab_ref[ROW_EMB_B:ROW_EMB_B + 1, 0:HIDDEN])

    # Additive block-diagonal attention bias (key padding + cross-sequence -1e9),
    # precomputed in the wrapper and loaded once for the whole forward.
    bias = bias_ref[...]                                              # [N_TOK, N_TOK]

    for l in range(N_LAYERS):
        base = ROW_LAYER0 + l * ROWS_PER_LAYER
        wqkv = mat_ref[l, :, COL_WQKV:COL_WQKV + 3 * HIDDEN]          # [H, 3H]
        wo = mat_ref[l, :, COL_WO:COL_WO + HIDDEN]                    # [H, H]
        w1 = mat_ref[l, :, COL_W1:COL_W1 + INTERMEDIATE]              # [H, I]
        w2t = mat_ref[l, :, COL_W2T:COL_W2T + INTERMEDIATE]           # [H, I] == w2.T

        bqkv = tab_ref[base + 0:base + 1, 0:3 * HIDDEN]
        bo = tab_ref[base + 1:base + 2, 0:HIDDEN]
        ln1_g = tab_ref[base + 2:base + 3, 0:HIDDEN]
        ln1_b = tab_ref[base + 3:base + 4, 0:HIDDEN]
        b1 = tab_ref[base + 4:base + 5, 0:INTERMEDIATE]
        b2 = tab_ref[base + 5:base + 6, 0:HIDDEN]
        ln2_g = tab_ref[base + 6:base + 7, 0:HIDDEN]
        ln2_b = tab_ref[base + 7:base + 8, 0:HIDDEN]

        # ---- fused Q/K/V projection: one [N,H]x[H,3H] MXU pass ----
        qkv = jnp.dot(x, wqkv, preferred_element_type=jnp.float32) + bqkv     # [N, 3H]

        # ---- batch-folded multi-head self-attention ----
        # 1/sqrt(Dh) is folded into the packed Q weights; the [N,N] bias handles both
        # key padding and cross-sequence isolation, so one score matmul covers all B.
        ctx_heads = []
        for h in range(N_HEADS):
            q = qkv[:, h * HEAD_DIM:(h + 1) * HEAD_DIM]                              # [N, Dh]
            k = qkv[:, HIDDEN + h * HEAD_DIM:HIDDEN + (h + 1) * HEAD_DIM]            # [N, Dh]
            v = qkv[:, 2 * HIDDEN + h * HEAD_DIM:2 * HIDDEN + (h + 1) * HEAD_DIM]    # [N, Dh]

            scores = jnp.dot(q, k.T, preferred_element_type=jnp.float32) + bias      # [N, N]
            scores = scores - jnp.max(scores, axis=-1, keepdims=True)
            p = jnp.exp(scores)
            probs = p * pl.reciprocal(jnp.sum(p, axis=-1, keepdims=True), approx=True)
            ctx_heads.append(jnp.dot(probs, v, preferred_element_type=jnp.float32))  # [N, Dh]

        # single output projection for all heads: concat_h(ctx_h) @ Wo
        ctx = jnp.concatenate(ctx_heads, axis=1)                                     # [N, H]
        attn_out = jnp.dot(ctx, wo, preferred_element_type=jnp.float32) + bo

        # ---- residual + LayerNorm 1 ----
        x = layernorm(attn_out + x, ln1_g, ln1_b)

        # ---- FFN: matmul + bias + GELU + matmul + bias, all fused ----
        ff = jnp.dot(x, w1, preferred_element_type=jnp.float32) + b1
        # TODO(synk): HF BERT default is exact erf GELU; tanh approximation used here.
        ff = jax.nn.gelu(ff, approximate=True)
        ff = jnp.dot(ff, w2t.T, preferred_element_type=jnp.float32) + b2

        # ---- residual + LayerNorm 2 ----
        x = layernorm(ff + x, ln2_g, ln2_b)

    # ---- CLS token extraction (row b*S of each sequence), single store ----
    cls = jnp.concatenate([x[b * S:b * S + 1, :] for b in range(B)], axis=0)   # [B, H]
    cls_ref[...] = cls.astype(cls_ref.dtype)


def fused_encoder(ids, attn_bias, packed):
    vmem = pl.BlockSpec(memory_space=pltpu.MemorySpace.VMEM)
    # Grid-free on purpose: ~100 KB working set, nothing to pipeline; any grid would
    # only add fixed per-step overhead (v5e/v6e/v7x alike).
    # TODO(synk): if B*S grows, add a "parallel" grid axis over tokens so v7x's second
    # TensorCore can share the work, and cast matmul inputs to bf16 on v6e/v7x.
    return pl.pallas_call(
        _fused_encoder_kernel,
        out_shape=jax.ShapeDtypeStruct((B, HIDDEN), jnp.float32),
        in_specs=[vmem, vmem, vmem, vmem],
        out_specs=vmem,
    )(ids, attn_bias, packed["mat"], packed["tab"])


# ---- parameters --------------------------------------------------------------
def init_params(key):
    def nrm(k, shape):
        return 0.02 * jax.random.normal(k, shape, jnp.float32)

    keys = iter(jax.random.split(key, 8 + 12 * N_LAYERS))
    params = {
        "word_emb": nrm(next(keys), (VOCAB, HIDDEN)),
        "pos_emb": nrm(next(keys), (MAX_POS, HIDDEN)),
        "type_emb": nrm(next(keys), (2, HIDDEN)),
        "emb_ln_g": jnp.ones((HIDDEN,), jnp.float32),
        "emb_ln_b": jnp.zeros((HIDDEN,), jnp.float32),
        "layers": [],
    }
    for _ in range(N_LAYERS):
        layer = {
            "wq": nrm(next(keys), (HIDDEN, HIDDEN)),
            "bq": jnp.zeros((HIDDEN,), jnp.float32),
            "wk": nrm(next(keys), (HIDDEN, HIDDEN)),
            "bk": jnp.zeros((HIDDEN,), jnp.float32),
            "wv": nrm(next(keys), (HIDDEN, HIDDEN)),
            "bv": jnp.zeros((HIDDEN,), jnp.float32),
            "wo": nrm(next(keys), (HIDDEN, HIDDEN)),
            "bo": jnp.zeros((HIDDEN,), jnp.float32),
            "ln1_g": jnp.ones((HIDDEN,), jnp.float32),
            "ln1_b": jnp.zeros((HIDDEN,), jnp.float32),
            "w1": nrm(next(keys), (HIDDEN, INTERMEDIATE)),
            "b1": jnp.zeros((INTERMEDIATE,), jnp.float32),
            "w2": nrm(next(keys), (INTERMEDIATE, HIDDEN)),
            "b2": jnp.zeros((HIDDEN,), jnp.float32),
            "ln2_g": jnp.ones((HIDDEN,), jnp.float32),
            "ln2_b": jnp.zeros((HIDDEN,), jnp.float32),
        }
        params["layers"].append(layer)
    return params


def pack_params(params):
    """One-time host-side packing into two flat f32 blobs (4 kernel input DMAs total)."""
    layers = params["layers"]
    inv_sqrt_dh = 1.0 / math.sqrt(HEAD_DIM)

    # --- matrix blob [L, H, MAT_COLS]: wqkv | wo | w1 | w2^T (softmax scale folded into wq) ---
    mats = []
    for lp in layers:
        wqkv = jnp.concatenate([lp["wq"] * inv_sqrt_dh, lp["wk"], lp["wv"]], axis=1)  # [H, 3H]
        mats.append(jnp.concatenate([wqkv, lp["wo"], lp["w1"], lp["w2"].T], axis=1))  # [H, 256]
    mat = jnp.stack(mats, axis=0)
    assert mat.shape == (N_LAYERS, HIDDEN, MAT_COLS)

    # --- table blob [TAB_ROWS, TAB_COLS]: embedding tables + every bias / LayerNorm vector ---
    def pad_cols(a):
        return jnp.pad(a, ((0, 0), (0, TAB_COLS - a.shape[1])))

    def row(v):
        return pad_cols(v.reshape(1, -1))

    word_tab = jnp.pad(params["word_emb"], ((0, VOCAB_PAD - VOCAB), (0, 0)))
    # TODO(synk): token_type_ids hard-coded to 0 (as in the reference usage).
    pos_type = params["pos_emb"][:S] + params["type_emb"][0][None, :]     # [S, H]
    pos_type = jnp.tile(pos_type, (B, 1))                                 # [N_TOK, H]

    rows = [pad_cols(word_tab), pad_cols(pos_type),
            row(params["emb_ln_g"]), row(params["emb_ln_b"])]
    for lp in layers:
        bqkv = jnp.concatenate([lp["bq"] * inv_sqrt_dh, lp["bk"], lp["bv"]])
        rows += [row(bqkv), row(lp["bo"]), row(lp["ln1_g"]), row(lp["ln1_b"]),
                 row(lp["b1"]), row(lp["b2"]), row(lp["ln2_g"]), row(lp["ln2_b"])]
    tab = jnp.concatenate(rows, axis=0)
    assert tab.shape == (TAB_ROWS, TAB_COLS)

    return {"mat": mat, "tab": tab}


# ---- model forward (plain-JAX glue: only ids reshape + attention-bias build) --
def legal_model_forward(packed, input_ids, attention_mask):
    ids = input_ids.reshape(N_TOK, 1).astype(jnp.int32)       # gather happens in-kernel
    # Block-diagonal additive attention bias: 0 where query & key belong to the same
    # sequence AND the key is not padding, -1e9 otherwise.  Built once per forward.
    seq_id = jnp.repeat(jnp.arange(B, dtype=jnp.int32), S)                      # [N_TOK]
    same_seq = seq_id[:, None] == seq_id[None, :]
    key_valid = attention_mask.reshape(N_TOK) > 0
    attn_bias = jnp.where(same_seq & key_valid[None, :],
                          jnp.float32(0.0), jnp.float32(-1e9))                  # [N_TOK, N_TOK]
    cls_output = fused_encoder(ids, attn_bias, packed)   # == last_hidden_state[:, 0, :]
    return cls_output


if __name__ == "__main__":
    key = jax.random.PRNGKey(0)
    k_params, k_ids = jax.random.split(key)
    params = init_params(k_params)
    packed = pack_params(params)

    input_ids = jax.random.randint(k_ids, (B, S), 0, VOCAB, dtype=jnp.int32)
    attention_mask = jnp.ones((B, S), jnp.int32)
    attention_mask = attention_mask.at[1, S - 2:].set(0)   # some padding in sequence 1

    cls = jax.jit(legal_model_forward)(packed, input_ids, attention_mask)
    cls = jax.block_until_ready(cls)
    assert cls.shape == (B, HIDDEN) and cls.dtype == jnp.float32
    assert bool(jnp.all(jnp.isfinite(cls)))
    print("KERNEL_OK")
</pallas_src>

<mosaic_0001>
module attributes {stable_mosaic.version = 11 : i64} {
  func.func @_fused_encoder_kernel(%arg0: memref<16x1xi32, #tpu.memory_space<vmem>>, %arg1: memref<16x16xf32, #tpu.memory_space<vmem>>, %arg2: memref<2x32x256xf32, #tpu.memory_space<vmem>>, %arg3: memref<138x96xf32, #tpu.memory_space<vmem>>, %arg4: memref<2x32xf32, #tpu.memory_space<vmem>>) attributes {dimension_semantics = [], scalar_prefetch = 0 : i64, scratch_operands = 0 : i64, tpu.core_type = #tpu.core_type<tc>} {
    %c0 = arith.constant 0 : index
    %c0_0 = arith.constant 0 : index
    %0 = vector.load %arg0[%c0, %c0_0] : memref<16x1xi32, #tpu.memory_space<vmem>>, vector<16x1xi32>
    %1 = tpu.iota {dimensions = array<i32: 1>} : vector<16x104xi32>
    %2 = vector.broadcast %0 : vector<16x1xi32> to vector<16x104xi32>
    %3 = arith.cmpi eq, %2, %1 : vector<16x104xi32>
    %c0_1 = arith.constant 0 : index
    %c0_2 = arith.constant 0 : index
    %4 = vector.load %arg3[%c0_1, %c0_2] : memref<138x96xf32, #tpu.memory_space<vmem>>, vector<104x32xf32>
    %5 = arith.extui %3 : vector<16x104xi1> to vector<16x104xi32>
    %6 = arith.sitofp %5 : vector<16x104xi32> to vector<16x104xf32>
    %cst = arith.constant dense<0.000000e+00> : vector<16x32xf32>
    %7 = tpu.matmul %6, %4, %cst {dimension_numbers = #tpu.dot_dimension_numbers<[1], [0], [0], [1], [0, 0, 1, 1], [], []>} : vector<16x104xf32>, vector<104x32xf32>, vector<16x32xf32> -> vector<16x32xf32>
    %c104 = arith.constant 104 : index
    %c0_3 = arith.constant 0 : index
    %8 = vector.load %arg3[%c104, %c0_3] : memref<138x96xf32, #tpu.memory_space<vmem>>, vector<16x32xf32>
    %9 = arith.addf %7, %8 : vector<16x32xf32>
    %c120 = arith.constant 120 : index
    %c0_4 = arith.constant 0 : index
    %10 = vector.load %arg3[%c120, %c0_4] : memref<138x96xf32, #tpu.memory_space<vmem>>, vector<1x32xf32>
    %c121 = arith.constant 121 : index
    %c0_5 = arith.constant 0 : index
    %11 = vector.load %arg3[%c121, %c0_5] : memref<138x96xf32, #tpu.memory_space<vmem>>, vector<1x32xf32>
    %cst_6 = arith.constant dense<0.000000e+00> : vector<16xf32>
    %12 = vector.multi_reduction <add>, %9, %cst_6 [1] : vector<16x32xf32> to vector<16xf32>
    %13 = vector.shape_cast %12 : vector<16xf32> to vector<16x1xf32>
    %cst_7 = arith.constant 3.200000e+01 : f32
    %14 = vector.broadcast %cst_7 : f32 to vector<16x1xf32>
    %15 = arith.divf %13, %14 : vector<16x1xf32>
    %16 = vector.broadcast %15 : vector<16x1xf32> to vector<16x32xf32>
    %17 = arith.subf %9, %16 : vector<16x32xf32>
    %18 = arith.mulf %17, %17 : vector<16x32xf32>
    %cst_8 = arith.constant dense<0.000000e+00> : vector<16xf32>
    %19 = vector.multi_reduction <add>, %18, %cst_8 [1] : vector<16x32xf32> to vector<16xf32>
    %20 = vector.shape_cast %19 : vector<16xf32> to vector<16x1xf32>
    %cst_9 = arith.constant 3.200000e+01 : f32
    %21 = vector.broadcast %cst_9 : f32 to vector<16x1xf32>
    %22 = arith.divf %20, %21 : vector<16x1xf32>
    %23 = vector.broadcast %15 : vector<16x1xf32> to vector<16x32xf32>
    %24 = arith.subf %9, %23 : vector<16x32xf32>
    %cst_10 = arith.constant 9.99999996E-13 : f32
    %25 = vector.broadcast %cst_10 : f32 to vector<16x1xf32>
    %26 = arith.addf %22, %25 : vector<16x1xf32>
    %27 = math.rsqrt %26 : vector<16x1xf32>
    %28 = vector.broadcast %27 : vector<16x1xf32> to vector<16x32xf32>
    %29 = arith.mulf %24, %28 : vector<16x32xf32>
    %30 = vector.broadcast %10 : vector<1x32xf32> to vector<16x32xf32>
    %31 = arith.mulf %29, %30 : vector<16x32xf32>
    %32 = vector.broadcast %11 : vector<1x32xf32> to vector<16x32xf32>
    %33 = arith.addf %31, %32 : vector<16x32xf32>
    %c0_11 = arith.constant 0 : index
    %c0_12 = arith.constant 0 : index
    %34 = vector.load %arg1[%c0_11, %c0_12] : memref<16x16xf32, #tpu.memory_space<vmem>>, vector<16x16xf32>
    %c0_13 = arith.constant 0 : index
    %c0_14 = arith.constant 0 : index
    %c0_15 = arith.constant 0 : index
    %35 = vector.load %arg2[%c0_13, %c0_14, %c0_15] : memref<2x32x256xf32, #tpu.memory_space<vmem>>, vector<1x32x96xf32>
    %36 = vector.shape_cast %35 : vector<1x32x96xf32> to vector<32x96xf32>
    %c0_16 = arith.constant 0 : index
    %c0_17 = arith.constant 0 : index
    %c96 = arith.constant 96 : index
    %37 = vector.load %arg2[%c0_16, %c0_17, %c96] : memref<2x32x256xf32, #tpu.memory_space<vmem>>, vector<1x32x32xf32>
    %38 = vector.shape_cast %37 : vector<1x32x32xf32> to vector<32x32xf32>
    %c0_18 = arith.constant 0 : index
    %c0_19 = arith.constant 0 : index
    %c128 = arith.constant 128 : index
    %39 = vector.load %arg2[%c0_18, %c0_19, %c128] : memref<2x32x256xf32, #tpu.memory_space<vmem>>, vector<1x32x64xf32>
    %40 = vector.shape_cast %39 : vector<1x32x64xf32> to vector<32x64xf32>
    %c0_20 = arith.constant 0 : index
    %c0_21 = arith.constant 0 : index
    %c192 = arith.constant 192 : index
    %41 = vector.load %arg2[%c0_20, %c0_21, %c192] : memref<2x32x256xf32, #tpu.memory_space<vmem>>, vector<1x32x64xf32>
    %42 = vector.shape_cast %41 : vector<1x32x64xf32> to vector<32x64xf32>
    %c122 = arith.constant 122 : index
    %c0_22 = arith.constant 0 : index
    %43 = vector.load %arg3[%c122, %c0_22] : memref<138x96xf32, #tpu.memory_space<vmem>>, vector<1x96xf32>
    %c123 = arith.constant 123 : index
    %c0_23 = arith.constant 0 : index
    %44 = vector.load %arg3[%c123, %c0_23] : memref<138x96xf32, #tpu.memory_space<vmem>>, vector<1x32xf32>
    %c124 = arith.constant 124 : index
    %c0_24 = arith.constant 0 : index
    %45 = vector.load %arg3[%c124, %c0_24] : memref<138x96xf32, #tpu.memory_space<vmem>>, vector<1x32xf32>
    %c125 = arith.constant 125 : index
    %c0_25 = arith.constant 0 : index
    %46 = vector.load %arg3[%c125, %c0_25] : memref<138x96xf32, #tpu.memory_space<vmem>>, vector<1x32xf32>
    %c126 = arith.constant 126 : index
    %c0_26 = arith.constant 0 : index
    %47 = vector.load %arg3[%c126, %c0_26] : memref<138x96xf32, #tpu.memory_space<vmem>>, vector<1x64xf32>
    %c127 = arith.constant 127 : index
    %c0_27 = arith.constant 0 : index
    %48 = vector.load %arg3[%c127, %c0_27] : memref<138x96xf32, #tpu.memory_space<vmem>>, vector<1x32xf32>
    %c128_28 = arith.constant 128 : index
    %c0_29 = arith.constant 0 : index
    %49 = vector.load %arg3[%c128_28, %c0_29] : memref<138x96xf32, #tpu.memory_space<vmem>>, vector<1x32xf32>
    %c129 = arith.constant 129 : index
    %c0_30 = arith.constant 0 : index
    %50 = vector.load %arg3[%c129, %c0_30] : memref<138x96xf32, #tpu.memory_space<vmem>>, vector<1x32xf32>
    %cst_31 = arith.constant dense<0.000000e+00> : vector<16x96xf32>
    %51 = tpu.matmul %33, %36, %cst_31 {dimension_numbers = #tpu.dot_dimension_numbers<[1], [0], [0], [1], [0, 0, 1, 1], [], []>} : vector<16x32xf32>, vector<32x96xf32>, vector<16x96xf32> -> vector<16x96xf32>
    %52 = vector.broadcast %43 : vector<1x96xf32> to vector<16x96xf32>
    %53 = arith.addf %51, %52 : vector<16x96xf32>
    %54 = vector.extract_strided_slice %53 {offsets = [0, 0], sizes = [16, 8], strides = [1, 1]} : vector<16x96xf32> to vector<16x8xf32>
    %55 = vector.extract_strided_slice %53 {offsets = [0, 32], sizes = [16, 8], strides = [1, 1]} : vector<16x96xf32> to vector<16x8xf32>
    %56 = vector.extract_strided_slice %53 {offsets = [0, 64], sizes = [16, 8], strides = [1, 1]} : vector<16x96xf32> to vector<16x8xf32>
    %57 = tpu.transpose %55, [1, 0] : vector<16x8xf32> -> vector<8x16xf32>
    %cst_32 = arith.constant dense<0.000000e+00> : vector<16x16xf32>
    %58 = tpu.matmul %54, %57, %cst_32 {dimension_numbers = #tpu.dot_dimension_numbers<[1], [0], [0], [1], [0, 0, 1, 1], [], []>} : vector<16x8xf32>, vector<8x16xf32>, vector<16x16xf32> -> vector<16x16xf32>
    %59 = arith.addf %58, %34 : vector<16x16xf32>
    %cst_33 = arith.constant dense<0xFF800000> : vector<16xf32>
    %60 = vector.multi_reduction <maximumf>, %59, %cst_33 [1] : vector<16x16xf32> to vector<16xf32>
    %61 = vector.shape_cast %60 : vector<16xf32> to vector<16x1xf32>
    %62 = vector.broadcast %61 : vector<16x1xf32> to vector<16x16xf32>
    %63 = arith.subf %59, %62 : vector<16x16xf32>
    %64 = math.exp %63 : vector<16x16xf32>
    %cst_34 = arith.constant dense<0.000000e+00> : vector<16xf32>
    %65 = vector.multi_reduction <add>, %64, %cst_34 [1] : vector<16x16xf32> to vector<16xf32>
    %66 = vector.shape_cast %65 : vector<16xf32> to vector<16x1xf32>
    %67 = tpu.reciprocal %66 {approx = true} : vector<16x1xf32> -> vector<16x1xf32>
    %68 = vector.broadcast %67 : vector<16x1xf32> to vector<16x16xf32>
    %69 = arith.mulf %64, %68 : vector<16x16xf32>
    %cst_35 = arith.constant dense<0.000000e+00> : vector<16x8xf32>
    %70 = tpu.matmul %69, %56, %cst_35 {dimension_numbers = #tpu.dot_dimension_numbers<[1], [0], [0], [1], [0, 0, 1, 1], [], []>} : vector<16x16xf32>, vector<16x8xf32>, vector<16x8xf32> -> vector<16x8xf32>
    %71 = vector.extract_strided_slice %53 {offsets = [0, 8], sizes = [16, 8], strides = [1, 1]} : vector<16x96xf32> to vector<16x8xf32>
    %72 = vector.extract_strided_slice %53 {offsets = [0, 40], sizes = [16, 8], strides = [1, 1]} : vector<16x96xf32> to vector<16x8xf32>
    %73 = vector.extract_strided_slice %53 {offsets = [0, 72], sizes = [16, 8], strides = [1, 1]} : vector<16x96xf32> to vector<16x8xf32>
    %74 = tpu.transpose %72, [1, 0] : vector<16x8xf32> -> vector<8x16xf32>
    %cst_36 = arith.constant dense<0.000000e+00> : vector<16x16xf32>
    %75 = tpu.matmul %71, %74, %cst_36 {dimension_numbers = #tpu.dot_dimension_numbers<[1], [0], [0], [1], [0, 0, 1, 1], [], []>} : vector<16x8xf32>, vector<8x16xf32>, vector<16x16xf32> -> vector<16x16xf32>
    %76 = arith.addf %75, %34 : vector<16x16xf32>
    %cst_37 = arith.constant dense<0xFF800000> : vector<16xf32>
    %77 = vector.multi_reduction <maximumf>, %76, %cst_37 [1] : vector<16x16xf32> to vector<16xf32>
    %78 = vector.shape_cast %77 : vector<16xf32> to vector<16x1xf32>
    %79 = vector.broadcast %78 : vector<16x1xf32> to vector<16x16xf32>
    %80 = arith.subf %76, %79 : vector<16x16xf32>
    %81 = math.exp %80 : vector<16x16xf32>
    %cst_38 = arith.constant dense<0.000000e+00> : vector<16xf32>
    %82 = vector.multi_reduction <add>, %81, %cst_38 [1] : vector<16x16xf32> to vector<16xf32>
    %83 = vector.shape_cast %82 : vector<16xf32> to vector<16x1xf32>
    %84 = tpu.reciprocal %83 {approx = true} : vector<16x1xf32> -> vector<16x1xf32>
    %85 = vector.broadcast %84 : vector<16x1xf32> to vector<16x16xf32>
    %86 = arith.mulf %81, %85 : vector<16x16xf32>
    %cst_39 = arith.constant dense<0.000000e+00> : vector<16x8xf32>
    %87 = tpu.matmul %86, %73, %cst_39 {dimension_numbers = #tpu.dot_dimension_numbers<[1], [0], [0], [1], [0, 0, 1, 1], [], []>} : vector<16x16xf32>, vector<16x8xf32>, vector<16x8xf32> -> vector<16x8xf32>
    %88 = vector.extract_strided_slice %53 {offsets = [0, 16], sizes = [16, 8], strides = [1, 1]} : vector<16x96xf32> to vector<16x8xf32>
    %89 = vector.extract_strided_slice %53 {offsets = [0, 48], sizes = [16, 8], strides = [1, 1]} : vector<16x96xf32> to vector<16x8xf32>
    %90 = vector.extract_strided_slice %53 {offsets = [0, 80], sizes = [16, 8], strides = [1, 1]} : vector<16x96xf32> to vector<16x8xf32>
    %91 = tpu.transpose %89, [1, 0] : vector<16x8xf32> -> vector<8x16xf32>
    %cst_40 = arith.constant dense<0.000000e+00> : vector<16x16xf32>
    %92 = tpu.matmul %88, %91, %cst_40 {dimension_numbers = #tpu.dot_dimension_numbers<[1], [0], [0], [1], [0, 0, 1, 1], [], []>} : vector<16x8xf32>, vector<8x16xf32>, vector<16x16xf32> -> vector<16x16xf32>
    %93 = arith.addf %92, %34 : vector<16x16xf32>
    %cst_41 = arith.constant dense<0xFF800000> : vector<16xf32>
    %94 = vector.multi_reduction <maximumf>, %93, %cst_41 [1] : vector<16x16xf32> to vector<16xf32>
    %95 = vector.shape_cast %94 : vector<16xf32> to vector<16x1xf32>
    %96 = vector.broadcast %95 : vector<16x1xf32> to vector<16x16xf32>
    %97 = arith.subf %93, %96 : vector<16x16xf32>
    %98 = math.exp %97 : vector<16x16xf32>
    %cst_42 = arith.constant dense<0.000000e+00> : vector<16xf32>
    %99 = vector.multi_reduction <add>, %98, %cst_42 [1] : vector<16x16xf32> to vector<16xf32>
    %100 = vector.shape_cast %99 : vector<16xf32> to vector<16x1xf32>
    %101 = tpu.reciprocal %100 {approx = true} : vector<16x1xf32> -> vector<16x1xf32>
    %102 = vector.broadcast %101 : vector<16x1xf32> to vector<16x16xf32>
    %103 = arith.mulf %98, %102 : vector<16x16xf32>
    %cst_43 = arith.constant dense<0.000000e+00> : vector<16x8xf32>
    %104 = tpu.matmul %103, %90, %cst_43 {dimension_numbers = #tpu.dot_dimension_numbers<[1], [0], [0], [1], [0, 0, 1, 1], [], []>} : vector<16x16xf32>, vector<16x8xf32>, vector<16x8xf32> -> vector<16x8xf32>
    %105 = vector.extract_strided_slice %53 {offsets = [0, 24], sizes = [16, 8], strides = [1, 1]} : vector<16x96xf32> to vector<16x8xf32>
    %106 = vector.extract_strided_slice %53 {offsets = [0, 56], sizes = [16, 8], strides = [1, 1]} : vector<16x96xf32> to vector<16x8xf32>
    %107 = vector.extract_strided_slice %53 {offsets = [0, 88], sizes = [16, 8], strides = [1, 1]} : vector<16x96xf32> to vector<16x8xf32>
    %108 = tpu.transpose %106, [1, 0] : vector<16x8xf32> -> vector<8x16xf32>
    %cst_44 = arith.constant dense<0.000000e+00> : vector<16x16xf32>
    %109 = tpu.matmul %105, %108, %cst_44 {dimension_numbers = #tpu.dot_dimension_numbers<[1], [0], [0], [1], [0, 0, 1, 1], [], []>} : vector<16x8xf32>, vector<8x16xf32>, vector<16x16xf32> -> vector<16x16xf32>
    %110 = arith.addf %109, %34 : vector<16x16xf32>
    %cst_45 = arith.constant dense<0xFF800000> : vector<16xf32>
    %111 = vector.multi_reduction <maximumf>, %110, %cst_45 [1] : vector<16x16xf32> to vector<16xf32>
    %112 = vector.shape_cast %111 : vector<16xf32> to vector<16x1xf32>
    %113 = vector.broadcast %112 : vector<16x1xf32> to vector<16x16xf32>
    %114 = arith.subf %110, %113 : vector<16x16xf32>
    %115 = math.exp %114 : vector<16x16xf32>
    %cst_46 = arith.constant dense<0.000000e+00> : vector<16xf32>
    %116 = vector.multi_reduction <add>, %115, %cst_46 [1] : vector<16x16xf32> to vector<16xf32>
    %117 = vector.shape_cast %116 : vector<16xf32> to vector<16x1xf32>
    %118 = tpu.reciprocal %117 {approx = true} : vector<16x1xf32> -> vector<16x1xf32>
    %119 = vector.broadcast %118 : vector<16x1xf32> to vector<16x16xf32>
    %120 = arith.mulf %115, %119 : vector<16x16xf32>
    %cst_47 = arith.constant dense<0.000000e+00> : vector<16x8xf32>
    %121 = tpu.matmul %120, %107, %cst_47 {dimension_numbers = #tpu.dot_dimension_numbers<[1], [0], [0], [1], [0, 0, 1, 1], [], []>} : vector<16x16xf32>, vector<16x8xf32>, vector<16x8xf32> -> vector<16x8xf32>
    %122 = tpu.concatenate %70, %87, %104, %121 in 1 : vector<16x8xf32>, vector<16x8xf32>, vector<16x8xf32>, vector<16x8xf32> -> vector<16x32xf32>
    %cst_48 = arith.constant dense<0.000000e+00> : vector<16x32xf32>
    %123 = tpu.matmul %122, %38, %cst_48 {dimension_numbers = #tpu.dot_dimension_numbers<[1], [0], [0], [1], [0, 0, 1, 1], [], []>} : vector<16x32xf32>, vector<32x32xf32>, vector<16x32xf32> -> vector<16x32xf32>
    %124 = vector.broadcast %44 : vector<1x32xf32> to vector<16x32xf32>
    %125 = arith.addf %123, %124 : vector<16x32xf32>
    %126 = arith.addf %125, %33 : vector<16x32xf32>
    %cst_49 = arith.constant dense<0.000000e+00> : vector<16xf32>
    %127 = vector.multi_reduction <add>, %126, %cst_49 [1] : vector<16x32xf32> to vector<16xf32>
    %128 = vector.shape_cast %127 : vector<16xf32> to vector<16x1xf32>
    %cst_50 = arith.constant 3.200000e+01 : f32
    %129 = vector.broadcast %cst_50 : f32 to vector<16x1xf32>
    %130 = arith.divf %128, %129 : vector<16x1xf32>
    %131 = vector.broadcast %130 : vector<16x1xf32> to vector<16x32xf32>
    %132 = arith.subf %126, %131 : vector<16x32xf32>
    %133 = arith.mulf %132, %132 : vector<16x32xf32>
    %cst_51 = arith.constant dense<0.000000e+00> : vector<16xf32>
    %134 = vector.multi_reduction <add>, %133, %cst_51 [1] : vector<16x32xf32> to vector<16xf32>
    %135 = vector.shape_cast %134 : vector<16xf32> to vector<16x1xf32>
    %cst_52 = arith.constant 3.200000e+01 : f32
    %136 = vector.broadcast %cst_52 : f32 to vector<16x1xf32>
    %137 = arith.divf %135, %136 : vector<16x1xf32>
    %138 = vector.broadcast %130 : vector<16x1xf32> to vector<16x32xf32>
    %139 = arith.subf %126, %138 : vector<16x32xf32>
    %cst_53 = arith.constant 9.99999996E-13 : f32
    %140 = vector.broadcast %cst_53 : f32 to vector<16x1xf32>
    %141 = arith.addf %137, %140 : vector<16x1xf32>
    %142 = math.rsqrt %141 : vector<16x1xf32>
    %143 = vector.broadcast %142 : vector<16x1xf32> to vector<16x32xf32>
    %144 = arith.mulf %139, %143 : vector<16x32xf32>
    %145 = vector.broadcast %45 : vector<1x32xf32> to vector<16x32xf32>
    %146 = arith.mulf %144, %145 : vector<16x32xf32>
    %147 = vector.broadcast %46 : vector<1x32xf32> to vector<16x32xf32>
    %148 = arith.addf %146, %147 : vector<16x32xf32>
    %cst_54 = arith.constant dense<0.000000e+00> : vector<16x64xf32>
    %149 = tpu.matmul %148, %40, %cst_54 {dimension_numbers = #tpu.dot_dimension_numbers<[1], [0], [0], [1], [0, 0, 1, 1], [], []>} : vector<16x32xf32>, vector<32x64xf32>, vector<16x64xf32> -> vector<16x64xf32>
    %150 = vector.broadcast %47 : vector<1x64xf32> to vector<16x64xf32>
    %151 = arith.addf %149, %150 : vector<16x64xf32>
    %152 = arith.mulf %151, %151 : vector<16x64xf32>
    %153 = arith.mulf %151, %152 : vector<16x64xf32>
    %cst_55 = arith.constant 4.471500e-02 : f32
    %154 = vector.broadcast %cst_55 : f32 to vector<16x64xf32>
    %155 = arith.mulf %154, %153 : vector<16x64xf32>
    %156 = arith.addf %151, %155 : vector<16x64xf32>
    %cst_56 = arith.constant 0.797884583 : f32
    %157 = vector.broadcast %cst_56 : f32 to vector<16x64xf32>
    %158 = arith.mulf %157, %156 : vector<16x64xf32>
    %159 = math.tanh %158 : vector<16x64xf32>
    %cst_57 = arith.constant 1.000000e+00 : f32
    %160 = vector.broadcast %cst_57 : f32 to vector<16x64xf32>
    %161 = arith.addf %160, %159 : vector<16x64xf32>
    %cst_58 = arith.constant 5.000000e-01 : f32
    %162 = vector.broadcast %cst_58 : f32 to vector<16x64xf32>
    %163 = arith.mulf %162, %161 : vector<16x64xf32>
    %164 = arith.mulf %151, %163 : vector<16x64xf32>
    %165 = tpu.transpose %42, [1, 0] : vector<32x64xf32> -> vector<64x32xf32>
    %cst_59 = arith.constant dense<0.000000e+00> : vector<16x32xf32>
    %166 = tpu.matmul %164, %165, %cst_59 {dimension_numbers = #tpu.dot_dimension_numbers<[1], [0], [0], [1], [0, 0, 1, 1], [], []>} : vector<16x64xf32>, vector<64x32xf32>, vector<16x32xf32> -> vector<16x32xf32>
    %167 = vector.broadcast %48 : vector<1x32xf32> to vector<16x32xf32>
    %168 = arith.addf %166, %167 : vector<16x32xf32>
    %169 = arith.addf %168, %148 : vector<16x32xf32>
    %cst_60 = arith.constant dense<0.000000e+00> : vector<16xf32>
    %170 = vector.multi_reduction <add>, %169, %cst_60 [1] : vector<16x32xf32> to vector<16xf32>
    %171 = vector.shape_cast %170 : vector<16xf32> to vector<16x1xf32>
    %cst_61 = arith.constant 3.200000e+01 : f32
    %172 = vector.broadcast %cst_61 : f32 to vector<16x1xf32>
    %173 = arith.divf %171, %172 : vector<16x1xf32>
    %174 = vector.broadcast %173 : vector<16x1xf32> to vector<16x32xf32>
    %175 = arith.subf %169, %174 : vector<16x32xf32>
    %176 = arith.mulf %175, %175 : vector<16x32xf32>
    %cst_62 = arith.constant dense<0.000000e+00> : vector<16xf32>
    %177 = vector.multi_reduction <add>, %176, %cst_62 [1] : vector<16x32xf32> to vector<16xf32>
    %178 = vector.shape_cast %177 : vector<16xf32> to vector<16x1xf32>
    %cst_63 = arith.constant 3.200000e+01 : f32
    %179 = vector.broadcast %cst_63 : f32 to vector<16x1xf32>
    %180 = arith.divf %178, %179 : vector<16x1xf32>
    %181 = vector.broadcast %173 : vector<16x1xf32> to vector<16x32xf32>
    %182 = arith.subf %169, %181 : vector<16x32xf32>
    %cst_64 = arith.constant 9.99999996E-13 : f32
    %183 = vector.broadcast %cst_64 : f32 to vector<16x1xf32>
    %184 = arith.addf %180, %183 : vector<16x1xf32>
    %185 = math.rsqrt %184 : vector<16x1xf32>
    %186 = vector.broadcast %185 : vector<16x1xf32> to vector<16x32xf32>
    %187 = arith.mulf %182, %186 : vector<16x32xf32>
    %188 = vector.broadcast %49 : vector<1x32xf32> to vector<16x32xf32>
    %189 = arith.mulf %187, %188 : vector<16x32xf32>
    %190 = vector.broadcast %50 : vector<1x32xf32> to vector<16x32xf32>
    %191 = arith.addf %189, %190 : vector<16x32xf32>
    %c1 = arith.constant 1 : index
    %c0_65 = arith.constant 0 : index
    %c0_66 = arith.constant 0 : index
    %192 = vector.load %arg2[%c1, %c0_65, %c0_66] : memref<2x32x256xf32, #tpu.memory_space<vmem>>, vector<1x32x96xf32>
    %193 = vector.shape_cast %192 : vector<1x32x96xf32> to vector<32x96xf32>
    %c1_67 = arith.constant 1 : index
    %c0_68 = arith.constant 0 : index
    %c96_69 = arith.constant 96 : index
    %194 = vector.load %arg2[%c1_67, %c0_68, %c96_69] : memref<2x32x256xf32, #tpu.memory_space<vmem>>, vector<1x32x32xf32>
    %195 = vector.shape_cast %194 : vector<1x32x32xf32> to vector<32x32xf32>
    %c1_70 = arith.constant 1 : index
    %c0_71 = arith.constant 0 : index
    %c128_72 = arith.constant 128 : index
    %196 = vector.load %arg2[%c1_70, %c0_71, %c128_72] : memref<2x32x256xf32, #tpu.memory_space<vmem>>, vector<1x32x64xf32>
    %197 = vector.shape_cast %196 : vector<1x32x64xf32> to vector<32x64xf32>
    %c1_73 = arith.constant 1 : index
    %c0_74 = arith.constant 0 : index
    %c192_75 = arith.constant 192 : index
    %198 = vector.load %arg2[%c1_73, %c0_74, %c192_75] : memref<2x32x256xf32, #tpu.memory_space<vmem>>, vector<1x32x64xf32>
    %199 = vector.shape_cast %198 : vector<1x32x64xf32> to vector<32x64xf32>
    %c130 = arith.constant 130 : index
    %c0_76 = arith.constant 0 : index
    %200 = vector.load %arg3[%c130, %c0_76] : memref<138x96xf32, #tpu.memory_space<vmem>>, vector<1x96xf32>
    %c131 = arith.constant 131 : index
    %c0_77 = arith.constant 0 : index
    %201 = vector.load %arg3[%c131, %c0_77] : memref<138x96xf32, #tpu.memory_space<vmem>>, vector<1x32xf32>
    %c132 = arith.constant 132 : index
    %c0_78 = arith.constant 0 : index
    %202 = vector.load %arg3[%c132, %c0_78] : memref<138x96xf32, #tpu.memory_space<vmem>>, vector<1x32xf32>
    %c133 = arith.constant 133 : index
    %c0_79 = arith.constant 0 : index
    %203 = vector.load %arg3[%c133, %c0_79] : memref<138x96xf32, #tpu.memory_space<vmem>>, vector<1x32xf32>
    %c134 = arith.constant 134 : index
    %c0_80 = arith.constant 0 : index
    %204 = vector.load %arg3[%c134, %c0_80] : memref<138x96xf32, #tpu.memory_space<vmem>>, vector<1x64xf32>
    %c135 = arith.constant 135 : index
    %c0_81 = arith.constant 0 : index
    %205 = vector.load %arg3[%c135, %c0_81] : memref<138x96xf32, #tpu.memory_space<vmem>>, vector<1x32xf32>
    %c136 = arith.constant 136 : index
    %c0_82 = arith.constant 0 : index
    %206 = vector.load %arg3[%c136, %c0_82] : memref<138x96xf32, #tpu.memory_space<vmem>>, vector<1x32xf32>
    %c137 = arith.constant 137 : index
    %c0_83 = arith.constant 0 : index
    %207 = vector.load %arg3[%c137, %c0_83] : memref<138x96xf32, #tpu.memory_space<vmem>>, vector<1x32xf32>
    %cst_84 = arith.constant dense<0.000000e+00> : vector<16x96xf32>
    %208 = tpu.matmul %191, %193, %cst_84 {dimension_numbers = #tpu.dot_dimension_numbers<[1], [0], [0], [1], [0, 0, 1, 1], [], []>} : vector<16x32xf32>, vector<32x96xf32>, vector<16x96xf32> -> vector<16x96xf32>
    %209 = vector.broadcast %200 : vector<1x96xf32> to vector<16x96xf32>
    %210 = arith.addf %208, %209 : vector<16x96xf32>
    %211 = vector.extract_strided_slice %210 {offsets = [0, 0], sizes = [16, 8], strides = [1, 1]} : vector<16x96xf32> to vector<16x8xf32>
    %212 = vector.extract_strided_slice %210 {offsets = [0, 32], sizes = [16, 8], strides = [1, 1]} : vector<16x96xf32> to vector<16x8xf32>
    %213 = vector.extract_strided_slice %210 {offsets = [0, 64], sizes = [16, 8], strides = [1, 1]} : vector<16x96xf32> to vector<16x8xf32>
    %214 = tpu.transpose %212, [1, 0] : vector<16x8xf32> -> vector<8x16xf32>
    %cst_85 = arith.constant dense<0.000000e+00> : vector<16x16xf32>
    %215 = tpu.matmul %211, %214, %cst_85 {dimension_numbers = #tpu.dot_dimension_numbers<[1], [0], [0], [1], [0, 0, 1, 1], [], []>} : vector<16x8xf32>, vector<8x16xf32>, vector<16x16xf32> -> vector<16x16xf32>
    %216 = arith.addf %215, %34 : vector<16x16xf32>
    %cst_86 = arith.constant dense<0xFF800000> : vector<16xf32>
    %217 = vector.multi_reduction <maximumf>, %216, %cst_86 [1] : vector<16x16xf32> to vector<16xf32>
    %218 = vector.shape_cast %217 : vector<16xf32> to vector<16x1xf32>
    %219 = vector.broadcast %218 : vector<16x1xf32> to vector<16x16xf32>
    %220 = arith.subf %216, %219 : vector<16x16xf32>
    %221 = math.exp %220 : vector<16x16xf32>
    %cst_87 = arith.constant dense<0.000000e+00> : vector<16xf32>
    %222 = vector.multi_reduction <add>, %221, %cst_87 [1] : vector<16x16xf32> to vector<16xf32>
    %223 = vector.shape_cast %222 : vector<16xf32> to vector<16x1xf32>
    %224 = tpu.reciprocal %223 {approx = true} : vector<16x1xf32> -> vector<16x1xf32>
    %225 = vector.broadcast %224 : vector<16x1xf32> to vector<16x16xf32>
    %226 = arith.mulf %221, %225 : vector<16x16xf32>
    %cst_88 = arith.constant dense<0.000000e+00> : vector<16x8xf32>
    %227 = tpu.matmul %226, %213, %cst_88 {dimension_numbers = #tpu.dot_dimension_numbers<[1], [0], [0], [1], [0, 0, 1, 1], [], []>} : vector<16x16xf32>, vector<16x8xf32>, vector<16x8xf32> -> vector<16x8xf32>
    %228 = vector.extract_strided_slice %210 {offsets = [0, 8], sizes = [16, 8], strides = [1, 1]} : vector<16x96xf32> to vector<16x8xf32>
    %229 = vector.extract_strided_slice %210 {offsets = [0, 40], sizes = [16, 8], strides = [1, 1]} : vector<16x96xf32> to vector<16x8xf32>
    %230 = vector.extract_strided_slice %210 {offsets = [0, 72], sizes = [16, 8], strides = [1, 1]} : vector<16x96xf32> to vector<16x8xf32>
    %231 = tpu.transpose %229, [1, 0] : vector<16x8xf32> -> vector<8x16xf32>
    %cst_89 = arith.constant dense<0.000000e+00> : vector<16x16xf32>
    %232 = tpu.matmul %228, %231, %cst_89 {dimension_numbers = #tpu.dot_dimension_numbers<[1], [0], [0], [1], [0, 0, 1, 1], [], []>} : vector<16x8xf32>, vector<8x16xf32>, vector<16x16xf32> -> vector<16x16xf32>
    %233 = arith.addf %232, %34 : vector<16x16xf32>
    %cst_90 = arith.constant dense<0xFF800000> : vector<16xf32>
    %234 = vector.multi_reduction <maximumf>, %233, %cst_90 [1] : vector<16x16xf32> to vector<16xf32>
    %235 = vector.shape_cast %234 : vector<16xf32> to vector<16x1xf32>
    %236 = vector.broadcast %235 : vector<16x1xf32> to vector<16x16xf32>
    %237 = arith.subf %233, %236 : vector<16x16xf32>
    %238 = math.exp %237 : vector<16x16xf32>
    %cst_91 = arith.constant dense<0.000000e+00> : vector<16xf32>
    %239 = vector.multi_reduction <add>, %238, %cst_91 [1] : vector<16x16xf32> to vector<16xf32>
    %240 = vector.shape_cast %239 : vector<16xf32> to vector<16x1xf32>
    %241 = tpu.reciprocal %240 {approx = true} : vector<16x1xf32> -> vector<16x1xf32>
    %242 = vector.broadcast %241 : vector<16x1xf32> to vector<16x16xf32>
    %243 = arith.mulf %238, %242 : vector<16x16xf32>
    %cst_92 = arith.constant dense<0.000000e+00> : vector<16x8xf32>
    %244 = tpu.matmul %243, %230, %cst_92 {dimension_numbers = #tpu.dot_dimension_numbers<[1], [0], [0], [1], [0, 0, 1, 1], [], []>} : vector<16x16xf32>, vector<16x8xf32>, vector<16x8xf32> -> vector<16x8xf32>
    %245 = vector.extract_strided_slice %210 {offsets = [0, 16], sizes = [16, 8], strides = [1, 1]} : vector<16x96xf32> to vector<16x8xf32>
    %246 = vector.extract_strided_slice %210 {offsets = [0, 48], sizes = [16, 8], strides = [1, 1]} : vector<16x96xf32> to vector<16x8xf32>
    %247 = vector.extract_strided_slice %210 {offsets = [0, 80], sizes = [16, 8], strides = [1, 1]} : vector<16x96xf32> to vector<16x8xf32>
    %248 = tpu.transpose %246, [1, 0] : vector<16x8xf32> -> vector<8x16xf32>
    %cst_93 = arith.constant dense<0.000000e+00> : vector<16x16xf32>
    %249 = tpu.matmul %245, %248, %cst_93 {dimension_numbers = #tpu.dot_dimension_numbers<[1], [0], [0], [1], [0, 0, 1, 1], [], []>} : vector<16x8xf32>, vector<8x16xf32>, vector<16x16xf32> -> vector<16x16xf32>
    %250 = arith.addf %249, %34 : vector<16x16xf32>
    %cst_94 = arith.constant dense<0xFF800000> : vector<16xf32>
    %251 = vector.multi_reduction <maximumf>, %250, %cst_94 [1] : vector<16x16xf32> to vector<16xf32>
    %252 = vector.shape_cast %251 : vector<16xf32> to vector<16x1xf32>
    %253 = vector.broadcast %252 : vector<16x1xf32> to vector<16x16xf32>
    %254 = arith.subf %250, %253 : vector<16x16xf32>
    %255 = math.exp %254 : vector<16x16xf32>
    %cst_95 = arith.constant dense<0.000000e+00> : vector<16xf32>
    %256 = vector.multi_reduction <add>, %255, %cst_95 [1] : vector<16x16xf32> to vector<16xf32>
    %257 = vector.shape_cast %256 : vector<16xf32> to vector<16x1xf32>
    %258 = tpu.reciprocal %257 {approx = true} : vector<16x1xf32> -> vector<16x1xf32>
    %259 = vector.broadcast %258 : vector<16x1xf32> to vector<16x16xf32>
    %260 = arith.mulf %255, %259 : vector<16x16xf32>
    %cst_96 = arith.constant dense<0.000000e+00> : vector<16x8xf32>
    %261 = tpu.matmul %260, %247, %cst_96 {dimension_numbers = #tpu.dot_dimension_numbers<[1], [0], [0], [1], [0, 0, 1, 1], [], []>} : vector<16x16xf32>, vector<16x8xf32>, vector<16x8xf32> -> vector<16x8xf32>
    %262 = vector.extract_strided_slice %210 {offsets = [0, 24], sizes = [16, 8], strides = [1, 1]} : vector<16x96xf32> to vector<16x8xf32>
    %263 = vector.extract_strided_slice %210 {offsets = [0, 56], sizes = [16, 8], strides = [1, 1]} : vector<16x96xf32> to vector<16x8xf32>
    %264 = vector.extract_strided_slice %210 {offsets = [0, 88], sizes = [16, 8], strides = [1, 1]} : vector<16x96xf32> to vector<16x8xf32>
    %265 = tpu.transpose %263, [1, 0] : vector<16x8xf32> -> vector<8x16xf32>
    %cst_97 = arith.constant dense<0.000000e+00> : vector<16x16xf32>
    %266 = tpu.matmul %262, %265, %cst_97 {dimension_numbers = #tpu.dot_dimension_numbers<[1], [0], [0], [1], [0, 0, 1, 1], [], []>} : vector<16x8xf32>, vector<8x16xf32>, vector<16x16xf32> -> vector<16x16xf32>
    %267 = arith.addf %266, %34 : vector<16x16xf32>
    %cst_98 = arith.constant dense<0xFF800000> : vector<16xf32>
    %268 = vector.multi_reduction <maximumf>, %267, %cst_98 [1] : vector<16x16xf32> to vector<16xf32>
    %269 = vector.shape_cast %268 : vector<16xf32> to vector<16x1xf32>
    %270 = vector.broadcast %269 : vector<16x1xf32> to vector<16x16xf32>
    %271 = arith.subf %267, %270 : vector<16x16xf32>
    %272 = math.exp %271 : vector<16x16xf32>
    %cst_99 = arith.constant dense<0.000000e+00> : vector<16xf32>
    %273 = vector.multi_reduction <add>, %272, %cst_99 [1] : vector<16x16xf32> to vector<16xf32>
    %274 = vector.shape_cast %273 : vector<16xf32> to vector<16x1xf32>
    %275 = tpu.reciprocal %274 {approx = true} : vector<16x1xf32> -> vector<16x1xf32>
    %276 = vector.broadcast %275 : vector<16x1xf32> to vector<16x16xf32>
    %277 = arith.mulf %272, %276 : vector<16x16xf32>
    %cst_100 = arith.constant dense<0.000000e+00> : vector<16x8xf32>
    %278 = tpu.matmul %277, %264, %cst_100 {dimension_numbers = #tpu.dot_dimension_numbers<[1], [0], [0], [1], [0, 0, 1, 1], [], []>} : vector<16x16xf32>, vector<16x8xf32>, vector<16x8xf32> -> vector<16x8xf32>
    %279 = tpu.concatenate %227, %244, %261, %278 in 1 : vector<16x8xf32>, vector<16x8xf32>, vector<16x8xf32>, vector<16x8xf32> -> vector<16x32xf32>
    %cst_101 = arith.constant dense<0.000000e+00> : vector<16x32xf32>
    %280 = tpu.matmul %279, %195, %cst_101 {dimension_numbers = #tpu.dot_dimension_numbers<[1], [0], [0], [1], [0, 0, 1, 1], [], []>} : vector<16x32xf32>, vector<32x32xf32>, vector<16x32xf32> -> vector<16x32xf32>
    %281 = vector.broadcast %201 : vector<1x32xf32> to vector<16x32xf32>
    %282 = arith.addf %280, %281 : vector<16x32xf32>
    %283 = arith.addf %282, %191 : vector<16x32xf32>
    %cst_102 = arith.constant dense<0.000000e+00> : vector<16xf32>
    %284 = vector.multi_reduction <add>, %283, %cst_102 [1] : vector<16x32xf32> to vector<16xf32>
    %285 = vector.shape_cast %284 : vector<16xf32> to vector<16x1xf32>
    %cst_103 = arith.constant 3.200000e+01 : f32
    %286 = vector.broadcast %cst_103 : f32 to vector<16x1xf32>
    %287 = arith.divf %285, %286 : vector<16x1xf32>
    %288 = vector.broadcast %287 : vector<16x1xf32> to vector<16x32xf32>
    %289 = arith.subf %283, %288 : vector<16x32xf32>
    %290 = arith.mulf %289, %289 : vector<16x32xf32>
    %cst_104 = arith.constant dense<0.000000e+00> : vector<16xf32>
    %291 = vector.multi_reduction <add>, %290, %cst_104 [1] : vector<16x32xf32> to vector<16xf32>
    %292 = vector.shape_cast %291 : vector<16xf32> to vector<16x1xf32>
    %cst_105 = arith.constant 3.200000e+01 : f32
    %293 = vector.broadcast %cst_105 : f32 to vector<16x1xf32>
    %294 = arith.divf %292, %293 : vector<16x1xf32>
    %295 = vector.broadcast %287 : vector<16x1xf32> to vector<16x32xf32>
    %296 = arith.subf %283, %295 : vector<16x32xf32>
    %cst_106 = arith.constant 9.99999996E-13 : f32
    %297 = vector.broadcast %cst_106 : f32 to vector<16x1xf32>
    %298 = arith.addf %294, %297 : vector<16x1xf32>
    %299 = math.rsqrt %298 : vector<16x1xf32>
    %300 = vector.broadcast %299 : vector<16x1xf32> to vector<16x32xf32>
    %301 = arith.mulf %296, %300 : vector<16x32xf32>
    %302 = vector.broadcast %202 : vector<1x32xf32> to vector<16x32xf32>
    %303 = arith.mulf %301, %302 : vector<16x32xf32>
    %304 = vector.broadcast %203 : vector<1x32xf32> to vector<16x32xf32>
    %305 = arith.addf %303, %304 : vector<16x32xf32>
    %cst_107 = arith.constant dense<0.000000e+00> : vector<16x64xf32>
    %306 = tpu.matmul %305, %197, %cst_107 {dimension_numbers = #tpu.dot_dimension_numbers<[1], [0], [0], [1], [0, 0, 1, 1], [], []>} : vector<16x32xf32>, vector<32x64xf32>, vector<16x64xf32> -> vector<16x64xf32>
    %307 = vector.broadcast %204 : vector<1x64xf32> to vector<16x64xf32>
    %308 = arith.addf %306, %307 : vector<16x64xf32>
    %309 = arith.mulf %308, %308 : vector<16x64xf32>
    %310 = arith.mulf %308, %309 : vector<16x64xf32>
    %cst_108 = arith.constant 4.471500e-02 : f32
    %311 = vector.broadcast %cst_108 : f32 to vector<16x64xf32>
    %312 = arith.mulf %311, %310 : vector<16x64xf32>
    %313 = arith.addf %308, %312 : vector<16x64xf32>
    %cst_109 = arith.constant 0.797884583 : f32
    %314 = vector.broadcast %cst_109 : f32 to vector<16x64xf32>
    %315 = arith.mulf %314, %313 : vector<16x64xf32>
    %316 = math.tanh %315 : vector<16x64xf32>
    %cst_110 = arith.constant 1.000000e+00 : f32
    %317 = vector.broadcast %cst_110 : f32 to vector<16x64xf32>
    %318 = arith.addf %317, %316 : vector<16x64xf32>
    %cst_111 = arith.constant 5.000000e-01 : f32
    %319 = vector.broadcast %cst_111 : f32 to vector<16x64xf32>
    %320 = arith.mulf %319, %318 : vector<16x64xf32>
    %321 = arith.mulf %308, %320 : vector<16x64xf32>
    %322 = tpu.transpose %199, [1, 0] : vector<32x64xf32> -> vector<64x32xf32>
    %cst_112 = arith.constant dense<0.000000e+00> : vector<16x32xf32>
    %323 = tpu.matmul %321, %322, %cst_112 {dimension_numbers = #tpu.dot_dimension_numbers<[1], [0], [0], [1], [0, 0, 1, 1], [], []>} : vector<16x64xf32>, vector<64x32xf32>, vector<16x32xf32> -> vector<16x32xf32>
    %324 = vector.broadcast %205 : vector<1x32xf32> to vector<16x32xf32>
    %325 = arith.addf %323, %324 : vector<16x32xf32>
    %326 = arith.addf %325, %305 : vector<16x32xf32>
    %cst_113 = arith.constant dense<0.000000e+00> : vector<16xf32>
    %327 = vector.multi_reduction <add>, %326, %cst_113 [1] : vector<16x32xf32> to vector<16xf32>
    %328 = vector.shape_cast %327 : vector<16xf32> to vector<16x1xf32>
    %cst_114 = arith.constant 3.200000e+01 : f32
    %329 = vector.broadcast %cst_114 : f32 to vector<16x1xf32>
    %330 = arith.divf %328, %329 : vector<16x1xf32>
    %331 = vector.broadcast %330 : vector<16x1xf32> to vector<16x32xf32>
    %332 = arith.subf %326, %331 : vector<16x32xf32>
    %333 = arith.mulf %332, %332 : vector<16x32xf32>
    %cst_115 = arith.constant dense<0.000000e+00> : vector<16xf32>
    %334 = vector.multi_reduction <add>, %333, %cst_115 [1] : vector<16x32xf32> to vector<16xf32>
    %335 = vector.shape_cast %334 : vector<16xf32> to vector<16x1xf32>
    %cst_116 = arith.constant 3.200000e+01 : f32
    %336 = vector.broadcast %cst_116 : f32 to vector<16x1xf32>
    %337 = arith.divf %335, %336 : vector<16x1xf32>
    %338 = vector.broadcast %330 : vector<16x1xf32> to vector<16x32xf32>
    %339 = arith.subf %326, %338 : vector<16x32xf32>
    %cst_117 = arith.constant 9.99999996E-13 : f32
    %340 = vector.broadcast %cst_117 : f32 to vector<16x1xf32>
    %341 = arith.addf %337, %340 : vector<16x1xf32>
    %342 = math.rsqrt %341 : vector<16x1xf32>
    %343 = vector.broadcast %342 : vector<16x1xf32> to vector<16x32xf32>
    %344 = arith.mulf %339, %343 : vector<16x32xf32>
    %345 = vector.broadcast %206 : vector<1x32xf32> to vector<16x32xf32>
    %346 = arith.mulf %344, %345 : vector<16x32xf32>
    %347 = vector.broadcast %207 : vector<1x32xf32> to vector<16x32xf32>
    %348 = arith.addf %346, %347 : vector<16x32xf32>
    %349 = vector.extract_strided_slice %348 {offsets = [0, 0], sizes = [1, 32], strides = [1, 1]} : vector<16x32xf32> to vector<1x32xf32>
    %350 = vector.extract_strided_slice %348 {offsets = [8, 0], sizes = [1, 32], strides = [1, 1]} : vector<16x32xf32> to vector<1x32xf32>
    %351 = tpu.concatenate %349, %350 in 0 : vector<1x32xf32>, vector<1x32xf32> -> vector<2x32xf32>
    %c0_118 = arith.constant 0 : index
    %c0_119 = arith.constant 0 : index
    %352 = vector.load %arg4[%c0_118, %c0_119] : memref<2x32xf32, #tpu.memory_space<vmem>>, vector<2x32xf32>
    tpu.vector_store %arg4[%c0_118, %c0_119], %351 {strides = array<i32>} : memref<2x32xf32, #tpu.memory_space<vmem>>, vector<2x32xf32>,
    return
  }
}

</mosaic_0001>

<llo_original>
// kernel: eq.8
$region0: #{eq.8}
  %s0 = inlined_call_operand.vmem [shape: s32[2,8], index: 0, kind: input, shape index: {}]
  %s1 = inlined_call_operand.vmem [shape: s32[16], index: 1, kind: output, shape index: {}]
  $region1: #{eq.8} parent=0
    #allocation0 [shape = 'u8[4096]{0}', space=vmem, size = 0x1000, scoped, tag = 'scoped mem for output reshape']
    #allocation1 [shape = 'u8[4096]{0}', space=vmem, size = 0x1000, scoped, tag = 'scoped mem for input reshape']
    %s3 = ssub.s32 4, 1
    %v4 = vld [vmem:[%s0] sm:%s3]
    %5 = vst [vmem:[#allocation1] sm:%s3] %v4
    %v6 = vld [vmem:[#allocation1] sm:$0x1]
    %vm7 = vcmask 64512
    %8 = vst.msk [vmem:[#allocation0] sm:$0x1] %vm7, %v6
    %s9 = scalar_lea.vmem [#allocation1], 1
    %v10 = vld [vmem:[%s9] sm:$0x1]
    %11 = vrot.lane.b32.xlu0 %v10, 8
    %v12 = vpop.permute.xlu0 %11
    %vm13 = vcmask 130112
    %14 = vst.msk [vmem:[#allocation0] sm:$0x1] %vm13, %v12
    %s16 = ssub.s32 2, 1
    %v17 = vld [vmem:[#allocation0] sm:%s16]
    %s19 = ssub.s32 2, 1
    %20 = vst [vmem:[%s1] sm:%s19] %v17

// kernel: legal_model_forward.1
$region0: #{legal_model_forward.1}
  #allocation0 [shape = 'u32[]', space=smem, size = 0x4, offset = 0x4, fixed_abs, tag = 'smem constant byte address 0x4 - core index']
  #allocation1 [shape = 'u32[72,128]{1,0:T(1,128)}', space=vmem, size = 0x9000, scoped, tag = 'internal scratch']
  %s0 = inlined_call_operand.vmem [shape: s32[16,1], index: 0, kind: input, shape index: {}]
  %s1 = inlined_call_operand.vmem [shape: f32[16,16], index: 1, kind: input, shape index: {}]
  %s2 = inlined_call_operand.hbm [shape: f32[2,32,256], index: 2, kind: input, shape index: {}]
  %s3 = inlined_call_operand.hbm [shape: f32[138,96], index: 3, kind: input, shape index: {}]
  %s4 = inlined_call_operand.hbm [shape: f32[2,32], index: 4, kind: output, shape index: {}]
  %s5 = sld [smem:[#allocation0]]
  $region34: #{legal_model_forward.1} parent=0
    _
  %s7 = ssub.s32 1, %s5
  %s8 = scalar_select 0, %s7, %s5
  $region1: #{legal_model_forward.1} parent=0
    #allocation2 [shape = 'u8[65536]{0}', space=vmem, size = 0x10000, scoped, tag = 'input window, operand 2, single buffered']
    #allocation3 [shape = 's32[1]{0}', space=sflag, size = 0x4, scoped, tag = 'scoped memory for legal_model_forward.1']
    #allocation4 [shape = 's32[1]{0}', space=sflag, size = 0x4, scoped, tag = 'scoped memory for legal_model_forward.1']
    #allocation5 [shape = 'u8[73728]{0}', space=vmem, size = 0x12000, scoped, tag = 'input window, operand 3, single buffered']
    #allocation6 [shape = 's32[1]{0}', space=sflag, size = 0x4, scoped, tag = 'scoped memory for legal_model_forward.1']
    #allocation7 [shape = 'u8[1024]{0}', space=vmem, size = 0x400, scoped, tag = 'output window, operand 0, single buffered']
    %9 = vsyncpa [#allocation3], 0
    %10 = vsyncpa [#allocation6], 0
    %11 = vsyncpa [#allocation4], 0
    // Predicated region
    $region2: #{legal_model_forward.1} parent=1 // pred_check
      _
    $region3: #{legal_model_forward.1} parent=1 // pred_check_branch
      %13 = sbr.rel (0) target = $region5
    $region4: #{legal_model_forward.1} parent=1 // pred_region
      _
    $region5: #{legal_model_forward.1} parent=1 // pred_fallthru
      _
    // Predicated region
    $region6: #{legal_model_forward.1} parent=1 // pred_check
      _
    $region7: #{legal_model_forward.1} parent=1 // pred_check_branch
      %15 = sbr.rel (0) target = $region9
    $region8: #{legal_model_forward.1} parent=1 // pred_region
      _
    $region9: #{legal_model_forward.1} parent=1 // pred_fallthru
      _
    // Predicated region
    $region10: #{legal_model_forward.1} parent=1 // pred_check
      _
    $region11: #{legal_model_forward.1} parent=1 // pred_check_branch
      %17 = sbr.rel (0) target = $region13
    $region12: #{legal_model_forward.1} parent=1 // pred_region
      %19 = vsyncadd [#allocation3], 0
      %s20 = sshll.u32 %s2, 4
      %s21 = int_to_ptr.hbm [resolvable:$true] %s20
      %s22 = sshll.u32 [#allocation2], 4
      %s23 = int_to_ptr.vmem [resolvable:$true] %s22
      %28 = dma.hbm_to_vmem [thread:$0]  %s21, 2048, %s23, [#allocation3], 256, 256, 16
    $region13: #{legal_model_forward.1} parent=1 // pred_fallthru
      _
    // Predicated region
    $region14: #{legal_model_forward.1} parent=1 // pred_check
      _
    $region15: #{legal_model_forward.1} parent=1 // pred_check_branch
      %30 = sbr.rel (0) target = $region17
    $region16: #{legal_model_forward.1} parent=1 // pred_region
      %32 = vsyncadd [#allocation6], 0
      %s33 = sshll.u32 %s3, 4
      %s34 = int_to_ptr.hbm [resolvable:$true] %s33
      %s35 = sshll.u32 [#allocation5], 4
      %s36 = int_to_ptr.vmem [resolvable:$true] %s35
      %41 = dma.hbm_to_vmem [thread:$0]  %s34, 2304, %s36, [#allocation6], 128, 128, 8
    $region17: #{legal_model_forward.1} parent=1 // pred_fallthru
      _
    // Predicated region
    $region18: #{legal_model_forward.1} parent=1 // pred_check
      _
    $region19: #{legal_model_forward.1} parent=1 // pred_check_branch
      %43 = sbr.rel (0) target = $region21
    $region20: #{legal_model_forward.1} parent=1 // pred_region
      %45 = dma.done [#allocation3], 2048
    $region21: #{legal_model_forward.1} parent=1 // pred_fallthru
      _
    // Predicated region
    $region22: #{legal_model_forward.1} parent=1 // pred_check
      _
    $region23: #{legal_model_forward.1} parent=1 // pred_check_branch
      %47 = sbr.rel (0) target = $region25
    $region24: #{legal_model_forward.1} parent=1 // pred_region
      %49 = dma.done [#allocation6], 2304
    $region25: #{legal_model_forward.1} parent=1 // pred_fallthru
      _
    %v50 = vld [vmem:[%s0] sm:$0xff]
    %v51 = vld [vmem:[%s0 + $0x8] sm:$0xff]
    %v52 = vlaneseq
    %v53 = vand.u32 %v52, 127
    %54 = vset.pattern.permute.xlu0 0
    %55 = vperm.xlu0 %54, %v50
    %v56 = vpop.permute.xlu0 %55
    %57 = vset.pattern.permute.xlu0 0
    %58 = vperm.xlu0 %57, %v51
    %v59 = vpop.permute.xlu0 %58
    %vm60 = vcmp.eq.s32.totalorder %v56, %v53
    %vm61 = vcmp.eq.s32.totalorder %v59, %v53
    %v62 = vld [vmem:[#allocation5] sm:$0xff]
    %v63 = vld [vmem:[#allocation5 + $0x8] sm:$0xff]
    %v64 = vld [vmem:[#allocation5 + $0x10] sm:$0xff]
    %v65 = vld [vmem:[#allocation5 + $0x18] sm:$0xff]
    %v66 = vld [vmem:[#allocation5 + $0x20] sm:$0xff]
    %v67 = vld [vmem:[#allocation5 + $0x28] sm:$0xff]
    %v68 = vld [vmem:[#allocation5 + $0x30] sm:$0xff]
    %v69 = vld [vmem:[#allocation5 + $0x38] sm:$0xff]
    %v70 = vld [vmem:[#allocation5 + $0x40] sm:$0xff]
    %v71 = vld [vmem:[#allocation5 + $0x48] sm:$0xff]
    %v72 = vld [vmem:[#allocation5 + $0x50] sm:$0xff]
    %v73 = vld [vmem:[#allocation5 + $0x58] sm:$0xff]
    %v74 = vld [vmem:[#allocation5 + $0x60] sm:$0xff]
    %v75 = vsel %vm60, 1, 0
    %v76 = vsel %vm61, 1, 0
    %v77 = vcvt.s32.f32 %v75
    %v78 = vcvt.s32.f32 %v76
    %v79 = vld [vmem:[#allocation5 + $0x68] sm:$0xff]
    %v80 = vld [vmem:[#allocation5 + $0x70] sm:$0xff]
    %vm81 = vcmask 850944
    %v83 = vsel %vm81, %v77, 0
    %v86 = vsel %vm81, %v78, 0
    %88 = vmatpush.msra.mxu0 0.0
    %89 = vmatpush.msra.mxu0 0.0
    %90 = vmatpush.msra.mxu0 0.0
    %91 = vmatpush.msra.mxu0 %v74
    %92 = vmatpush.msra.mxu0 %v73
    %93 = vmatpush.msra.mxu0 %v72
    %94 = vmatpush.msra.mxu0 %v71
    %95 = vmatpush.msra.mxu0 %v70
    %96 = vmatpush.msra.mxu0 %v69
    %97 = vmatpush.msra.mxu0 %v68
    %98 = vmatpush.msra.mxu0 %v67
    %99 = vmatpush.msra.mxu0 %v66
    %100 = vmatpush.msra.mxu0 %v65
    %101 = vmatpush.msra.mxu0 %v64
    %102 = vmatpush.msra.mxu0 %v63
    %103 = vmatpush.msra.mxu0 %v62
    %104 = vmatmul.f32.gmra.mxu0 %v83
    %v105 = vpop.f32.mrf.mxu0
    %v106 = vadd.f32 %v79, %v105
    %107 = vmatmul.f32.gmra.mxu0 %v86
    %v108 = vpop.f32.mrf.mxu0
    %v109 = vadd.f32 %v80, %v108
    %110 = vdwg.mxu0
    %v111 = vld [vmem:[#allocation5 + $0x78] sm:$0x1]
    %v112 = vld [vmem:[#allocation5 + $0x79] sm:$0x1]
    %vm113 = vcmask 261120
    %v114 = vsel %vm113, %v106, 0.0
    %115 = vadd.xlane.f32.xlu0 %v114
    %v116 = vpop.xlane.xlu0 %115
    %v117 = vsel %vm113, %v109, 0.0
    %118 = vadd.xlane.f32.xlu0 %v117
    %v119 = vpop.xlane.xlu0 %118
    %v120 = vrcp.pop 32.0
    %v121 = vmul.f32 32.0, %v120
    %v122 = vsub.f32 1.0, %v121
    %v123 = vmul.f32 %v120, %v122
    %v124 = vadd.f32 %v120, %v123
    %vm125 = vweird.f32 %v120
    %v126 = vsel %vm125, %v120, %v124
    %v127 = vmul.f32 %v116, %v126
    %v128 = vmul.f32 %v119, %v126
    %v129 = vsub.f32 %v106, %v127
    %v130 = vsub.f32 %v109, %v128
    %v131 = vmul.f32 %v129, %v129
    %v132 = vmul.f32 %v130, %v130
    %v133 = vsel %vm113, %v131, 0.0
    %134 = vadd.xlane.f32.xlu0 %v133
    %v135 = vpop.xlane.xlu0 %134
    %v136 = vsel %vm113, %v132, 0.0
    %137 = vadd.xlane.f32.xlu0 %v136
    %v138 = vpop.xlane.xlu0 %137
    %v139 = vmul.f32 %v135, %v126
    %v140 = vmul.f32 %v138, %v126
    %v141 = vadd.f32 %v139, 1e-12
    %v142 = vadd.f32 %v140, 1e-12
    %v143 = vrsqrt.pop %v141
    %v144 = vmul.f32 %v143, %v141
    %v145 = vmul.f32 %v144, %v143
    %v146 = vmul.f32 0.5, %v145
    %v147 = vsub.f32 1.5, %v146
    %v148 = vmul.f32 %v143, %v147
    %vm149 = vweird.f32 %v141
    %vm150 = vweird.f32 %v143
    %vm151 = vmor %vm149, %vm150
    %v152 = vsel %vm151, %v143, %v148
    %v153 = vrsqrt.pop %v142
    %v154 = vmul.f32 %v153, %v142
    %v155 = vmul.f32 %v154, %v153
    %v156 = vmul.f32 0.5, %v155
    %v157 = vsub.f32 1.5, %v156
    %v158 = vmul.f32 %v153, %v157
    %vm159 = vweird.f32 %v142
    %vm160 = vweird.f32 %v153
    %vm161 = vmor %vm159, %vm160
    %v162 = vsel %vm161, %v153, %v158
    %v163 = vmul.f32 %v129, %v152
    %v164 = vmul.f32 %v130, %v162
    %v165 = vperm.slane %v111, 0
    %v166 = vmul.f32 %v163, %v165
    %v167 = vmul.f32 %v164, %v165
    %v168 = vperm.slane %v112, 0
    %v169 = vadd.f32 %v166, %v168
    %v170 = vadd.f32 %v167, %v168
    %v171 = vld [vmem:[%s1] sm:$0xff]
    %v172 = vld [vmem:[%s1 + $0x8] sm:$0xff]
    %v173 = vld [vmem:[#allocation2] sm:$0xff]
    %v174 = vld [vmem:[#allocation2 + $0x10] sm:$0xff]
    %v175 = vld [vmem:[#allocation2 + $0x20] sm:$0xff]
    %v176 = vld [vmem:[#allocation2 + $0x30] sm:$0xff]
    %v177 = vld [vmem:[#allocation2 + $0x8] sm:$0xff]
    %v178 = vld [vmem:[#allocation2 + $0x18] sm:$0xff]
    %v179 = vld [vmem:[#allocation2 + $0x28] sm:$0xff]
    %v180 = vld [vmem:[#allocation2 + $0x38] sm:$0xff]
    %v181 = vld [vmem:[#allocation5 + $0x7a] sm:$0x1]
    %v182 = vld [vmem:[#allocation5 + $0x7b] sm:$0x1]
    %v183 = vld [vmem:[#allocation5 + $0x7c] sm:$0x1]
    %v184 = vld [vmem:[#allocation5 + $0x7d] sm:$0x1]
    %v185 = vld [vmem:[#allocation5 + $0x7e] sm:$0x1]
    %v186 = vld [vmem:[#allocation5 + $0x7f] sm:$0x1]
    %v187 = vld [vmem:[#allocation5 + $0x80] sm:$0x1]
    %v188 = vld [vmem:[#allocation5 + $0x81] sm:$0x1]
    %v189 = vperm.slane %v181, 0
    %v191 = vsel %vm113, %v169, 0
    %v194 = vsel %vm113, %v170, 0
    %196 = vmatpush.msra.mxu0 0.0
    %197 = vmatpush.msra.mxu0 0.0
    %198 = vmatpush.msra.mxu0 0.0
    %199 = vmatpush.msra.mxu0 0.0
    %200 = vmatpush.msra.mxu0 0.0
    %201 = vmatpush.msra.mxu0 0.0
    %202 = vmatpush.msra.mxu0 0.0
    %203 = vmatpush.msra.mxu0 0.0
    %204 = vmatpush.msra.mxu0 0.0
    %205 = vmatpush.msra.mxu0 0.0
    %206 = vmatpush.msra.mxu0 0.0
    %207 = vmatpush.msra.mxu0 0.0
    %208 = vmatpush.msra.mxu0 %v176
    %209 = vmatpush.msra.mxu0 %v175
    %210 = vmatpush.msra.mxu0 %v174
    %211 = vmatpush.msra.mxu0 %v173
    %212 = vmatmul.f32.gmra.mxu0 %v191
    %v213 = vpop.f32.mrf.mxu0
    %v214 = vadd.f32 %v189, %v213
    %215 = vmatmul.f32.gmra.mxu0 %v194
    %v216 = vpop.f32.mrf.mxu0
    %v217 = vadd.f32 %v189, %v216
    %218 = vdwg.mxu0
    %221 = vrot.lane.b32.xlu0 %v214, 96
    %v222 = vpop.permute.xlu0 %221
    %223 = vrot.lane.b32.xlu0 %v217, 96
    %v224 = vpop.permute.xlu0 %223
    %vm225 = vcmask 64512
    %v226 = vsel %vm225, %v214, 0
    %v228 = vsel %vm225, %v217, 0
    %v230 = vsel %vm225, %v222, 0
    %v232 = vsel %vm225, %v224, 0
    %234 = vmatpush.xpose.msra.mxu0 0.0
    %235 = vmatpush.xpose.msra.mxu0 0.0
    %236 = vmatpush.xpose.msra.mxu0 0.0
    %237 = vmatpush.xpose.msra.mxu0 0.0
    %238 = vmatpush.xpose.msra.mxu0 0.0
    %239 = vmatpush.xpose.msra.mxu0 0.0
    %240 = vmatpush.xpose.msra.mxu0 0.0
    %241 = vmatpush.xpose.msra.mxu0 0.0
    %242 = vmatpush.xpose.msra.mxu0 0.0
    %243 = vmatpush.xpose.msra.mxu0 0.0
    %244 = vmatpush.xpose.msra.mxu0 0.0
    %245 = vmatpush.xpose.msra.mxu0 0.0
    %246 = vmatpush.xpose.msra.mxu0 0.0
    %247 = vmatpush.xpose.msra.mxu0 0.0
    %248 = vmatpush.xpose.msra.mxu0 %v232
    %249 = vmatpush.xpose.msra.mxu0 %v230
    %250 = vmatmul.f32.gmra.mxu0 %v226
    %v251 = vpop.f32.mrf.mxu0
    %v252 = vadd.f32 %v171, %v251
    %253 = vmatmul.f32.gmra.mxu0 %v228
    %v254 = vpop.f32.mrf.mxu0
    %v255 = vadd.f32 %v172, %v254
    %256 = vdwg.mxu0
    %vm257 = vcmask 130048
    %v258 = vsel %vm257, %v252, -inf
    %259 = vmax.xlane.f32.xlu0 %v258
    %v260 = vpop.xlane.xlu0 %259
    %v261 = vsel %vm257, %v255, -inf
    %262 = vmax.xlane.f32.xlu0 %v261
    %v263 = vpop.xlane.xlu0 %262
    %v264 = vsub.f32 %v252, %v260
    %v265 = vsub.f32 %v255, %v263
    %v266 = vmul.f32 %v264, 1.442695
    %v267 = vpow.pop %v266
    %v268 = vmul.f32 %v265, 1.442695
    %v269 = vpow.pop %v268
    %v270 = vsel %vm257, %v267, 0.0
    %271 = vadd.xlane.f32.xlu0 %v270
    %v272 = vpop.xlane.xlu0 %271
    %v273 = vsel %vm257, %v269, 0.0
    %274 = vadd.xlane.f32.xlu0 %v273
    %v275 = vpop.xlane.xlu0 %274
    %v276 = vrcp.pop %v272
    %v277 = vrcp.pop %v275
    %v278 = vmul.f32 %v267, %v276
    %v279 = vmul.f32 %v269, %v277
    %280 = vrot.lane.b32.xlu0 %v214, 64
    %v281 = vpop.permute.xlu0 %280
    %282 = vrot.lane.b32.xlu0 %v217, 64
    %v283 = vpop.permute.xlu0 %282
    %v287 = vsel %vm257, %v278, 0
    %v290 = vsel %vm257, %v279, 0
    %292 = vmatpush.msra.mxu0 0.0
    %293 = vmatpush.msra.mxu0 0.0
    %294 = vmatpush.msra.mxu0 0.0
    %295 = vmatpush.msra.mxu0 0.0
    %296 = vmatpush.msra.mxu0 0.0
    %297 = vmatpush.msra.mxu0 0.0
    %298 = vmatpush.msra.mxu0 0.0
    %299 = vmatpush.msra.mxu0 0.0
    %300 = vmatpush.msra.mxu0 0.0
    %301 = vmatpush.msra.mxu0 0.0
    %302 = vmatpush.msra.mxu0 0.0
    %303 = vmatpush.msra.mxu0 0.0
    %304 = vmatpush.msra.mxu0 0.0
    %305 = vmatpush.msra.mxu0 0.0
    %306 = vmatpush.msra.mxu0 %v283
    %307 = vmatpush.msra.mxu0 %v281
    %308 = vmatmul.f32.gmra.mxu0 %v287
    %v309 = vpop.f32.mrf.mxu0
    %v310 = vadd.f32 0.0, %v309
    %311 = vmatmul.f32.gmra.mxu0 %v290
    %v312 = vpop.f32.mrf.mxu0
    %v313 = vadd.f32 0.0, %v312
    %314 = vdwg.mxu0
    %315 = vrot.lane.b32.xlu0 %v214, 120
    %v316 = vpop.permute.xlu0 %315
    %317 = vrot.lane.b32.xlu0 %v217, 120
    %v318 = vpop.permute.xlu0 %317
    %319 = vrot.lane.b32.xlu0 %v214, 88
    %v320 = vpop.permute.xlu0 %319
    %321 = vrot.lane.b32.xlu0 %v217, 88
    %v322 = vpop.permute.xlu0 %321
    %v323 = vsel %vm225, %v316, 0
    %v325 = vsel %vm225, %v318, 0
    %v327 = vsel %vm225, %v320, 0
    %v329 = vsel %vm225, %v322, 0
    %331 = vmatpush.xpose.msra.mxu0 0.0
    %332 = vmatpush.xpose.msra.mxu0 0.0
    %333 = vmatpush.xpose.msra.mxu0 0.0
    %334 = vmatpush.xpose.msra.mxu0 0.0
    %335 = vmatpush.xpose.msra.mxu0 0.0
    %336 = vmatpush.xpose.msra.mxu0 0.0
    %337 = vmatpush.xpose.msra.mxu0 0.0
    %338 = vmatpush.xpose.msra.mxu0 0.0
    %339 = vmatpush.xpose.msra.mxu0 0.0
    %340 = vmatpush.xpose.msra.mxu0 0.0
    %341 = vmatpush.xpose.msra.mxu0 0.0
    %342 = vmatpush.xpose.msra.mxu0 0.0
    %343 = vmatpush.xpose.msra.mxu0 0.0
    %344 = vmatpush.xpose.msra.mxu0 0.0
    %345 = vmatpush.xpose.msra.mxu0 %v329
    %346 = vmatpush.xpose.msra.mxu0 %v327
    %347 = vmatmul.f32.gmra.mxu0 %v323
    %v348 = vpop.f32.mrf.mxu0
    %v349 = vadd.f32 %v171, %v348
    %350 = vmatmul.f32.gmra.mxu0 %v325
    %v351 = vpop.f32.mrf.mxu0
    %v352 = vadd.f32 %v172, %v351
    %353 = vdwg.mxu0
    %v354 = vsel %vm257, %v349, -inf
    %355 = vmax.xlane.f32.xlu0 %v354
    %v356 = vpop.xlane.xlu0 %355
    %v357 = vsel %vm257, %v352, -inf
    %358 = vmax.xlane.f32.xlu0 %v357
    %v359 = vpop.xlane.xlu0 %358
    %v360 = vsub.f32 %v349, %v356
    %v361 = vsub.f32 %v352, %v359
    %v362 = vmul.f32 %v360, 1.442695
    %v363 = vpow.pop %v362
    %v364 = vmul.f32 %v361, 1.442695
    %v365 = vpow.pop %v364
    %v366 = vsel %vm257, %v363, 0.0
    %367 = vadd.xlane.f32.xlu0 %v366
    %v368 = vpop.xlane.xlu0 %367
    %v369 = vsel %vm257, %v365, 0.0
    %370 = vadd.xlane.f32.xlu0 %v369
    %v371 = vpop.xlane.xlu0 %370
    %v372 = vrcp.pop %v368
    %v373 = vrcp.pop %v371
    %v374 = vmul.f32 %v363, %v372
    %v375 = vmul.f32 %v365, %v373
    %376 = vrot.lane.b32.xlu0 %v214, 56
    %v377 = vpop.permute.xlu0 %376
    %378 = vrot.lane.b32.xlu0 %v217, 56
    %v379 = vpop.permute.xlu0 %378
    %v383 = vsel %vm257, %v374, 0
    %v386 = vsel %vm257, %v375, 0
    %388 = vmatpush.msra.mxu0 0.0
    %389 = vmatpush.msra.mxu0 0.0
    %390 = vmatpush.msra.mxu0 0.0
    %391 = vmatpush.msra.mxu0 0.0
    %392 = vmatpush.msra.mxu0 0.0
    %393 = vmatpush.msra.mxu0 0.0
    %394 = vmatpush.msra.mxu0 0.0
    %395 = vmatpush.msra.mxu0 0.0
    %396 = vmatpush.msra.mxu0 0.0
    %397 = vmatpush.msra.mxu0 0.0
    %398 = vmatpush.msra.mxu0 0.0
    %399 = vmatpush.msra.mxu0 0.0
    %400 = vmatpush.msra.mxu0 0.0
    %401 = vmatpush.msra.mxu0 0.0
    %402 = vmatpush.msra.mxu0 %v379
    %403 = vmatpush.msra.mxu0 %v377
    %404 = vmatmul.f32.gmra.mxu0 %v383
    %v405 = vpop.f32.mrf.mxu0
    %v406 = vadd.f32 0.0, %v405
    %407 = vmatmul.f32.gmra.mxu0 %v386
    %v408 = vpop.f32.mrf.mxu0
    %v409 = vadd.f32 0.0, %v408
    %410 = vdwg.mxu0
    %411 = vrot.lane.b32.xlu0 %v214, 112
    %v412 = vpop.permute.xlu0 %411
    %413 = vrot.lane.b32.xlu0 %v217, 112
    %v414 = vpop.permute.xlu0 %413
    %415 = vrot.lane.b32.xlu0 %v214, 80
    %v416 = vpop.permute.xlu0 %415
    %417 = vrot.lane.b32.xlu0 %v217, 80
    %v418 = vpop.permute.xlu0 %417
    %v419 = vsel %vm225, %v412, 0
    %v421 = vsel %vm225, %v414, 0
    %v423 = vsel %vm225, %v416, 0
    %v425 = vsel %vm225, %v418, 0
    %427 = vmatpush.xpose.msra.mxu0 0.0
    %428 = vmatpush.xpose.msra.mxu0 0.0
    %429 = vmatpush.xpose.msra.mxu0 0.0
    %430 = vmatpush.xpose.msra.mxu0 0.0
    %431 = vmatpush.xpose.msra.mxu0 0.0
    %432 = vmatpush.xpose.msra.mxu0 0.0
    %433 = vmatpush.xpose.msra.mxu0 0.0
    %434 = vmatpush.xpose.msra.mxu0 0.0
    %435 = vmatpush.xpose.msra.mxu0 0.0
    %436 = vmatpush.xpose.msra.mxu0 0.0
    %437 = vmatpush.xpose.msra.mxu0 0.0
    %438 = vmatpush.xpose.msra.mxu0 0.0
    %439 = vmatpush.xpose.msra.mxu0 0.0
    %440 = vmatpush.xpose.msra.mxu0 0.0
    %441 = vmatpush.xpose.msra.mxu0 %v425
    %442 = vmatpush.xpose.msra.mxu0 %v423
    %443 = vmatmul.f32.gmra.mxu0 %v419
    %v444 = vpop.f32.mrf.mxu0
    %v445 = vadd.f32 %v171, %v444
    %446 = vmatmul.f32.gmra.mxu0 %v421
    %v447 = vpop.f32.mrf.mxu0
    %v448 = vadd.f32 %v172, %v447
    %449 = vdwg.mxu0
    %v450 = vsel %vm257, %v445, -inf
    %451 = vmax.xlane.f32.xlu0 %v450
    %v452 = vpop.xlane.xlu0 %451
    %v453 = vsel %vm257, %v448, -inf
    %454 = vmax.xlane.f32.xlu0 %v453
    %v455 = vpop.xlane.xlu0 %454
    %v456 = vsub.f32 %v445, %v452
    %v457 = vsub.f32 %v448, %v455
    %v458 = vmul.f32 %v456, 1.442695
    %v459 = vpow.pop %v458
    %v460 = vmul.f32 %v457, 1.442695
    %v461 = vpow.pop %v460
    %v462 = vsel %vm257, %v459, 0.0
    %463 = vadd.xlane.f32.xlu0 %v462
    %v464 = vpop.xlane.xlu0 %463
    %v465 = vsel %vm257, %v461, 0.0
    %466 = vadd.xlane.f32.xlu0 %v465
    %v467 = vpop.xlane.xlu0 %466
    %v468 = vrcp.pop %v464
    %v469 = vrcp.pop %v467
    %v470 = vmul.f32 %v459, %v468
    %v471 = vmul.f32 %v461, %v469
    %472 = vrot.lane.b32.xlu0 %v214, 48
    %v473 = vpop.permute.xlu0 %472
    %474 = vrot.lane.b32.xlu0 %v217, 48
    %v475 = vpop.permute.xlu0 %474
    %v479 = vsel %vm257, %v470, 0
    %v482 = vsel %vm257, %v471, 0
    %484 = vmatpush.msra.mxu0 0.0
    %485 = vmatpush.msra.mxu0 0.0
    %486 = vmatpush.msra.mxu0 0.0
    %487 = vmatpush.msra.mxu0 0.0
    %488 = vmatpush.msra.mxu0 0.0
    %489 = vmatpush.msra.mxu0 0.0
    %490 = vmatpush.msra.mxu0 0.0
    %491 = vmatpush.msra.mxu0 0.0
    %492 = vmatpush.msra.mxu0 0.0
    %493 = vmatpush.msra.mxu0 0.0
    %494 = vmatpush.msra.mxu0 0.0
    %495 = vmatpush.msra.mxu0 0.0
    %496 = vmatpush.msra.mxu0 0.0
    %497 = vmatpush.msra.mxu0 0.0
    %498 = vmatpush.msra.mxu0 %v475
    %499 = vmatpush.msra.mxu0 %v473
    %500 = vmatmul.f32.gmra.mxu0 %v479
    %v501 = vpop.f32.mrf.mxu0
    %v502 = vadd.f32 0.0, %v501
    %503 = vmatmul.f32.gmra.mxu0 %v482
    %v504 = vpop.f32.mrf.mxu0
    %v505 = vadd.f32 0.0, %v504
    %506 = vdwg.mxu0
    %507 = vrot.lane.b32.xlu0 %v214, 104
    %v508 = vpop.permute.xlu0 %507
    %509 = vrot.lane.b32.xlu0 %v217, 104
    %v510 = vpop.permute.xlu0 %509
    %511 = vrot.lane.b32.xlu0 %v214, 72
    %v512 = vpop.permute.xlu0 %511
    %513 = vrot.lane.b32.xlu0 %v217, 72
    %v514 = vpop.permute.xlu0 %513
    %v515 = vsel %vm225, %v508, 0
    %v517 = vsel %vm225, %v510, 0
    %v519 = vsel %vm225, %v512, 0
    %v521 = vsel %vm225, %v514, 0
    %523 = vmatpush.xpose.msra.mxu0 0.0
    %524 = vmatpush.xpose.msra.mxu0 0.0
    %525 = vmatpush.xpose.msra.mxu0 0.0
    %526 = vmatpush.xpose.msra.mxu0 0.0
    %527 = vmatpush.xpose.msra.mxu0 0.0
    %528 = vmatpush.xpose.msra.mxu0 0.0
    %529 = vmatpush.xpose.msra.mxu0 0.0
    %530 = vmatpush.xpose.msra.mxu0 0.0
    %531 = vmatpush.xpose.msra.mxu0 0.0
    %532 = vmatpush.xpose.msra.mxu0 0.0
    %533 = vmatpush.xpose.msra.mxu0 0.0
    %534 = vmatpush.xpose.msra.mxu0 0.0
    %535 = vmatpush.xpose.msra.mxu0 0.0
    %536 = vmatpush.xpose.msra.mxu0 0.0
    %537 = vmatpush.xpose.msra.mxu0 %v521
    %538 = vmatpush.xpose.msra.mxu0 %v519
    %539 = vmatmul.f32.gmra.mxu0 %v515
    %v540 = vpop.f32.mrf.mxu0
    %v541 = vadd.f32 %v171, %v540
    %542 = vmatmul.f32.gmra.mxu0 %v517
    %v543 = vpop.f32.mrf.mxu0
    %v544 = vadd.f32 %v172, %v543
    %545 = vdwg.mxu0
    %v546 = vsel %vm257, %v541, -inf
    %547 = vmax.xlane.f32.xlu0 %v546
    %v548 = vpop.xlane.xlu0 %547
    %v549 = vsel %vm257, %v544, -inf
    %550 = vmax.xlane.f32.xlu0 %v549
    %v551 = vpop.xlane.xlu0 %550
    %v552 = vsub.f32 %v541, %v548
    %v553 = vsub.f32 %v544, %v551
    %v554 = vmul.f32 %v552, 1.442695
    %v555 = vpow.pop %v554
    %v556 = vmul.f32 %v553, 1.442695
    %v557 = vpow.pop %v556
    %v558 = vsel %vm257, %v555, 0.0
    %559 = vadd.xlane.f32.xlu0 %v558
    %v560 = vpop.xlane.xlu0 %559
    %v561 = vsel %vm257, %v557, 0.0
    %562 = vadd.xlane.f32.xlu0 %v561
    %v563 = vpop.xlane.xlu0 %562
    %v564 = vrcp.pop %v560
    %v565 = vrcp.pop %v563
    %v566 = vmul.f32 %v555, %v564
    %v567 = vmul.f32 %v557, %v565
    %568 = vrot.lane.b32.xlu0 %v214, 40
    %v569 = vpop.permute.xlu0 %568
    %570 = vrot.lane.b32.xlu0 %v217, 40
    %v571 = vpop.permute.xlu0 %570
    %v575 = vsel %vm257, %v566, 0
    %v578 = vsel %vm257, %v567, 0
    %580 = vmatpush.msra.mxu0 0.0
    %581 = vmatpush.msra.mxu0 0.0
    %582 = vmatpush.msra.mxu0 0.0
    %583 = vmatpush.msra.mxu0 0.0
    %584 = vmatpush.msra.mxu0 0.0
    %585 = vmatpush.msra.mxu0 0.0
    %586 = vmatpush.msra.mxu0 0.0
    %587 = vmatpush.msra.mxu0 0.0
    %588 = vmatpush.msra.mxu0 0.0
    %589 = vmatpush.msra.mxu0 0.0
    %590 = vmatpush.msra.mxu0 0.0
    %591 = vmatpush.msra.mxu0 0.0
    %592 = vmatpush.msra.mxu0 0.0
    %593 = vmatpush.msra.mxu0 0.0
    %594 = vmatpush.msra.mxu0 %v571
    %595 = vmatpush.msra.mxu0 %v569
    %596 = vmatmul.f32.gmra.mxu0 %v575
    %v597 = vpop.f32.mrf.mxu0
    %v598 = vadd.f32 0.0, %v597
    %599 = vmatmul.f32.gmra.mxu0 %v578
    %v600 = vpop.f32.mrf.mxu0
    %v601 = vadd.f32 0.0, %v600
    %602 = vdwg.mxu0
    %605 = vrot.lane.b32.xlu0 %v406, 8
    %v606 = vpop.permute.xlu0 %605
    %607 = vrot.lane.b32.xlu0 %v409, 8
    %v608 = vpop.permute.xlu0 %607
    %613 = vrot.lane.b32.xlu0 %v502, 16
    %v614 = vpop.permute.xlu0 %613
    %615 = vrot.lane.b32.xlu0 %v505, 16
    %v616 = vpop.permute.xlu0 %615
    %621 = vrot.lane.b32.xlu0 %v598, 24
    %v622 = vpop.permute.xlu0 %621
    %623 = vrot.lane.b32.xlu0 %v601, 24
    %v624 = vpop.permute.xlu0 %623
    %v627 = vsel %vm225, %v310, %v606
    %v628 = vsel %vm225, %v313, %v608
    %v629 = vsel %vm257, %v627, %v614
    %v630 = vsel %vm257, %v628, %v616
    %vm631 = vcmask 195584
    %v632 = vsel %vm631, %v629, %v622
    %v633 = vsel %vm631, %v630, %v624
    %v634 = vperm.slane %v182, 0
    %639 = vrot.lane.b32.xlu0 %v173, 32
    %v640 = vpop.permute.xlu0 %639
    %641 = vrot.lane.b32.xlu0 %v174, 32
    %v642 = vpop.permute.xlu0 %641
    %643 = vrot.lane.b32.xlu0 %v175, 32
    %v644 = vpop.permute.xlu0 %643
    %645 = vrot.lane.b32.xlu0 %v176, 32
    %v646 = vpop.permute.xlu0 %645
    %v652 = vsel %vm113, %v632, 0
    %v655 = vsel %vm113, %v633, 0
    %657 = vmatpush.msra.mxu0 0.0
    %658 = vmatpush.msra.mxu0 0.0
    %659 = vmatpush.msra.mxu0 0.0
    %660 = vmatpush.msra.mxu0 0.0
    %661 = vmatpush.msra.mxu0 0.0
    %662 = vmatpush.msra.mxu0 0.0
    %663 = vmatpush.msra.mxu0 0.0
    %664 = vmatpush.msra.mxu0 0.0
    %665 = vmatpush.msra.mxu0 0.0
    %666 = vmatpush.msra.mxu0 0.0
    %667 = vmatpush.msra.mxu0 0.0
    %668 = vmatpush.msra.mxu0 0.0
    %669 = vmatpush.msra.mxu0 %v646
    %670 = vmatpush.msra.mxu0 %v644
    %671 = vmatpush.msra.mxu0 %v642
    %672 = vmatpush.msra.mxu0 %v640
    %673 = vmatmul.f32.gmra.mxu0 %v652
    %v674 = vpop.f32.mrf.mxu0
    %v675 = vadd.f32 %v634, %v674
    %676 = vmatmul.f32.gmra.mxu0 %v655
    %v677 = vpop.f32.mrf.mxu0
    %v678 = vadd.f32 %v634, %v677
    %679 = vdwg.mxu0
    %v680 = vadd.f32 %v675, %v169
    %v681 = vadd.f32 %v678, %v170
    %v682 = vsel %vm113, %v680, 0.0
    %683 = vadd.xlane.f32.xlu0 %v682
    %v684 = vpop.xlane.xlu0 %683
    %v685 = vsel %vm113, %v681, 0.0
    %686 = vadd.xlane.f32.xlu0 %v685
    %v687 = vpop.xlane.xlu0 %686
    %v688 = vmul.f32 %v684, %v126
    %v689 = vmul.f32 %v687, %v126
    %v690 = vsub.f32 %v680, %v688
    %v691 = vsub.f32 %v681, %v689
    %v692 = vmul.f32 %v690, %v690
    %v693 = vmul.f32 %v691, %v691
    %v694 = vsel %vm113, %v692, 0.0
    %695 = vadd.xlane.f32.xlu0 %v694
    %v696 = vpop.xlane.xlu0 %695
    %v697 = vsel %vm113, %v693, 0.0
    %698 = vadd.xlane.f32.xlu0 %v697
    %v699 = vpop.xlane.xlu0 %698
    %v700 = vmul.f32 %v696, %v126
    %v701 = vmul.f32 %v699, %v126
    %v702 = vadd.f32 %v700, 1e-12
    %v703 = vadd.f32 %v701, 1e-12
    %v704 = vrsqrt.pop %v702
    %v705 = vmul.f32 %v704, %v702
    %v706 = vmul.f32 %v705, %v704
    %v707 = vmul.f32 0.5, %v706
    %v708 = vsub.f32 1.5, %v707
    %v709 = vmul.f32 %v704, %v708
    %vm710 = vweird.f32 %v702
    %vm711 = vweird.f32 %v704
    %vm712 = vmor %vm710, %vm711
    %v713 = vsel %vm712, %v704, %v709
    %v714 = vrsqrt.pop %v703
    %v715 = vmul.f32 %v714, %v703
    %v716 = vmul.f32 %v715, %v714
    %v717 = vmul.f32 0.5, %v716
    %v718 = vsub.f32 1.5, %v717
    %v719 = vmul.f32 %v714, %v718
    %vm720 = vweird.f32 %v703
    %vm721 = vweird.f32 %v714
    %vm722 = vmor %vm720, %vm721
    %v723 = vsel %vm722, %v714, %v719
    %v724 = vmul.f32 %v690, %v713
    %v725 = vmul.f32 %v691, %v723
    %v726 = vperm.slane %v183, 0
    %v727 = vmul.f32 %v724, %v726
    %v728 = vmul.f32 %v725, %v726
    %v729 = vperm.slane %v184, 0
    %v730 = vadd.f32 %v727, %v729
    %v731 = vadd.f32 %v728, %v729
    %v732 = vperm.slane %v185, 0
    %v734 = vsel %vm113, %v730, 0
    %v737 = vsel %vm113, %v731, 0
    %739 = vmatpush.msra.mxu0 0.0
    %740 = vmatpush.msra.mxu0 0.0
    %741 = vmatpush.msra.mxu0 0.0
    %742 = vmatpush.msra.mxu0 0.0
    %743 = vmatpush.msra.mxu0 0.0
    %744 = vmatpush.msra.mxu0 0.0
    %745 = vmatpush.msra.mxu0 0.0
    %746 = vmatpush.msra.mxu0 0.0
    %747 = vmatpush.msra.mxu0 0.0
    %748 = vmatpush.msra.mxu0 0.0
    %749 = vmatpush.msra.mxu0 0.0
    %750 = vmatpush.msra.mxu0 0.0
    %751 = vmatpush.msra.mxu0 %v180
    %752 = vmatpush.msra.mxu0 %v179
    %753 = vmatpush.msra.mxu0 %v178
    %754 = vmatpush.msra.mxu0 %v177
    %755 = vmatmul.f32.gmra.mxu0 %v734
    %v756 = vpop.f32.mrf.mxu0
    %v757 = vadd.f32 %v732, %v756
    %758 = vmatmul.f32.gmra.mxu0 %v737
    %v759 = vpop.f32.mrf.mxu0
    %v760 = vadd.f32 %v732, %v759
    %761 = vdwg.mxu0
    %v762 = vmul.f32 %v757, %v757
    %v763 = vmul.f32 %v760, %v760
    %v764 = vmul.f32 %v757, %v762
    %v765 = vmul.f32 %v760, %v763
    %v766 = vmul.f32 %v764, 0.044715
    %v767 = vmul.f32 %v765, 0.044715
    %v768 = vadd.f32 %v757, %v766
    %v769 = vadd.f32 %v760, %v767
    %v770 = vmul.f32 %v768, 0.7978846
    %v771 = vmul.f32 %v769, 0.7978846
    %v772 = vtanh.pop %v770
    %v773 = vtanh.pop %v771
    %v774 = vadd.f32 %v772, 1.0
    %v775 = vadd.f32 %v773, 1.0
    %v776 = vmul.f32 %v774, 0.5
    %v777 = vmul.f32 %v775, 0.5
    %v778 = vmul.f32 %v757, %v776
    %v779 = vmul.f32 %v760, %v777
    %v780 = vperm.slane %v186, 0
    %785 = vrot.lane.b32.xlu0 %v177, 64
    %v786 = vpop.permute.xlu0 %785
    %787 = vrot.lane.b32.xlu0 %v178, 64
    %v788 = vpop.permute.xlu0 %787
    %789 = vrot.lane.b32.xlu0 %v179, 64
    %v790 = vpop.permute.xlu0 %789
    %791 = vrot.lane.b32.xlu0 %v180, 64
    %v792 = vpop.permute.xlu0 %791
    %vm793 = vcmask 523264
    %v795 = vsel %vm793, %v778, 0
    %v798 = vsel %vm793, %v779, 0
    %v800 = vsel %vm793, %v786, 0
    %v802 = vsel %vm793, %v788, 0
    %v804 = vsel %vm793, %v790, 0
    %v806 = vsel %vm793, %v792, 0
    %808 = vmatpush.xpose.msra.mxu0 0.0
    %809 = vmatpush.xpose.msra.mxu0 0.0
    %810 = vmatpush.xpose.msra.mxu0 0.0
    %811 = vmatpush.xpose.msra.mxu0 0.0
    %812 = vmatpush.xpose.msra.mxu0 0.0
    %813 = vmatpush.xpose.msra.mxu0 0.0
    %814 = vmatpush.xpose.msra.mxu0 0.0
    %815 = vmatpush.xpose.msra.mxu0 0.0
    %816 = vmatpush.xpose.msra.mxu0 0.0
    %817 = vmatpush.xpose.msra.mxu0 0.0
    %818 = vmatpush.xpose.msra.mxu0 0.0
    %819 = vmatpush.xpose.msra.mxu0 0.0
    %820 = vmatpush.xpose.msra.mxu0 %v806
    %821 = vmatpush.xpose.msra.mxu0 %v804
    %822 = vmatpush.xpose.msra.mxu0 %v802
    %823 = vmatpush.xpose.msra.mxu0 %v800
    %824 = vmatmul.f32.gmra.mxu0 %v795
    %v825 = vpop.f32.mrf.mxu0
    %v826 = vadd.f32 %v780, %v825
    %827 = vmatmul.f32.gmra.mxu0 %v798
    %v828 = vpop.f32.mrf.mxu0
    %v829 = vadd.f32 %v780, %v828
    %830 = vdwg.mxu0
    %v831 = vadd.f32 %v826, %v730
    %v832 = vadd.f32 %v829, %v731
    %v833 = vsel %vm113, %v831, 0.0
    %834 = vadd.xlane.f32.xlu0 %v833
    %v835 = vpop.xlane.xlu0 %834
    %v836 = vsel %vm113, %v832, 0.0
    %837 = vadd.xlane.f32.xlu0 %v836
    %v838 = vpop.xlane.xlu0 %837
    %v839 = vmul.f32 %v835, %v126
    %v840 = vmul.f32 %v838, %v126
    %v841 = vsub.f32 %v831, %v839
    %v842 = vsub.f32 %v832, %v840
    %v843 = vmul.f32 %v841, %v841
    %v844 = vmul.f32 %v842, %v842
    %v845 = vsel %vm113, %v843, 0.0
    %846 = vadd.xlane.f32.xlu0 %v845
    %v847 = vpop.xlane.xlu0 %846
    %v848 = vsel %vm113, %v844, 0.0
    %849 = vadd.xlane.f32.xlu0 %v848
    %v850 = vpop.xlane.xlu0 %849
    %v851 = vmul.f32 %v847, %v126
    %v852 = vmul.f32 %v850, %v126
    %v853 = vadd.f32 %v851, 1e-12
    %v854 = vadd.f32 %v852, 1e-12
    %v855 = vrsqrt.pop %v853
    %v856 = vmul.f32 %v855, %v853
    %v857 = vmul.f32 %v856, %v855
    %v858 = vmul.f32 0.5, %v857
    %v859 = vsub.f32 1.5, %v858
    %v860 = vmul.f32 %v855, %v859
    %vm861 = vweird.f32 %v853
    %vm862 = vweird.f32 %v855
    %vm863 = vmor %vm861, %vm862
    %v864 = vsel %vm863, %v855, %v860
    %v865 = vrsqrt.pop %v854
    %v866 = vmul.f32 %v865, %v854
    %v867 = vmul.f32 %v866, %v865
    %v868 = vmul.f32 0.5, %v867
    %v869 = vsub.f32 1.5, %v868
    %v870 = vmul.f32 %v865, %v869
    %vm871 = vweird.f32 %v854
    %vm872 = vweird.f32 %v865
    %vm873 = vmor %vm871, %vm872
    %v874 = vsel %vm873, %v865, %v870
    %v875 = vmul.f32 %v841, %v864
    %v876 = vmul.f32 %v842, %v874
    %v877 = vperm.slane %v187, 0
    %v878 = vmul.f32 %v875, %v877
    %v879 = vmul.f32 %v876, %v877
    %v880 = vperm.slane %v188, 0
    %v881 = vadd.f32 %v878, %v880
    %v882 = vadd.f32 %v879, %v880
    %s883 = scalar_lea.vmem [#allocation2], 64
    %v884 = vld [vmem:[%s883] sm:$0xff]
    %v885 = vld [vmem:[%s883 + $0x10] sm:$0xff]
    %v886 = vld [vmem:[%s883 + $0x20] sm:$0xff]
    %v887 = vld [vmem:[%s883 + $0x30] sm:$0xff]
    %v888 = vld [vmem:[%s883 + $0x8] sm:$0xff]
    %v889 = vld [vmem:[%s883 + $0x18] sm:$0xff]
    %v890 = vld [vmem:[%s883 + $0x28] sm:$0xff]
    %v891 = vld [vmem:[%s883 + $0x38] sm:$0xff]
    %v892 = vld [vmem:[#allocation5 + $0x82] sm:$0x1]
    %v893 = vld [vmem:[#allocation5 + $0x83] sm:$0x1]
    %v894 = vld [vmem:[#allocation5 + $0x84] sm:$0x1]
    %v895 = vld [vmem:[#allocation5 + $0x85] sm:$0x1]
    %v896 = vld [vmem:[#allocation5 + $0x86] sm:$0x1]
    %v897 = vld [vmem:[#allocation5 + $0x87] sm:$0x1]
    %v898 = vld [vmem:[#allocation5 + $0x88] sm:$0x1]
    %v899 = vld [vmem:[#allocation5 + $0x89] sm:$0x1]
    %v900 = vperm.slane %v892, 0
    %v902 = vsel %vm113, %v881, 0
    %v905 = vsel %vm113, %v882, 0
    %907 = vmatpush.msra.mxu0 0.0
    %908 = vmatpush.msra.mxu0 0.0
    %909 = vmatpush.msra.mxu0 0.0
    %910 = vmatpush.msra.mxu0 0.0
    %911 = vmatpush.msra.mxu0 0.0
    %912 = vmatpush.msra.mxu0 0.0
    %913 = vmatpush.msra.mxu0 0.0
    %914 = vmatpush.msra.mxu0 0.0
    %915 = vmatpush.msra.mxu0 0.0
    %916 = vmatpush.msra.mxu0 0.0
    %917 = vmatpush.msra.mxu0 0.0
    %918 = vmatpush.msra.mxu0 0.0
    %919 = vmatpush.msra.mxu0 %v887
    %920 = vmatpush.msra.mxu0 %v886
    %921 = vmatpush.msra.mxu0 %v885
    %922 = vmatpush.msra.mxu0 %v884
    %923 = vmatmul.f32.gmra.mxu0 %v902
    %v924 = vpop.f32.mrf.mxu0
    %v925 = vadd.f32 %v900, %v924
    %926 = vmatmul.f32.gmra.mxu0 %v905
    %v927 = vpop.f32.mrf.mxu0
    %v928 = vadd.f32 %v900, %v927
    %929 = vdwg.mxu0
    %932 = vrot.lane.b32.xlu0 %v925, 96
    %v933 = vpop.permute.xlu0 %932
    %934 = vrot.lane.b32.xlu0 %v928, 96
    %v935 = vpop.permute.xlu0 %934
    %v936 = vsel %vm225, %v925, 0
    %v938 = vsel %vm225, %v928, 0
    %v940 = vsel %vm225, %v933, 0
    %v942 = vsel %vm225, %v935, 0
    %944 = vmatpush.xpose.msra.mxu0 0.0
    %945 = vmatpush.xpose.msra.mxu0 0.0
    %946 = vmatpush.xpose.msra.mxu0 0.0
    %947 = vmatpush.xpose.msra.mxu0 0.0
    %948 = vmatpush.xpose.msra.mxu0 0.0
    %949 = vmatpush.xpose.msra.mxu0 0.0
    %950 = vmatpush.xpose.msra.mxu0 0.0
    %951 = vmatpush.xpose.msra.mxu0 0.0
    %952 = vmatpush.xpose.msra.mxu0 0.0
    %953 = vmatpush.xpose.msra.mxu0 0.0
    %954 = vmatpush.xpose.msra.mxu0 0.0
    %955 = vmatpush.xpose.msra.mxu0 0.0
    %956 = vmatpush.xpose.msra.mxu0 0.0
    %957 = vmatpush.xpose.msra.mxu0 0.0
    %958 = vmatpush.xpose.msra.mxu0 %v942
    %959 = vmatpush.xpose.msra.mxu0 %v940
    %960 = vmatmul.f32.gmra.mxu0 %v936
    %v961 = vpop.f32.mrf.mxu0
    %v962 = vadd.f32 %v171, %v961
    %963 = vmatmul.f32.gmra.mxu0 %v938
    %v964 = vpop.f32.mrf.mxu0
    %v965 = vadd.f32 %v172, %v964
    %966 = vdwg.mxu0
    %v967 = vsel %vm257, %v962, -inf
    %968 = vmax.xlane.f32.xlu0 %v967
    %v969 = vpop.xlane.xlu0 %968
    %v970 = vsel %vm257, %v965, -inf
    %971 = vmax.xlane.f32.xlu0 %v970
    %v972 = vpop.xlane.xlu0 %971
    %v973 = vsub.f32 %v962, %v969
    %v974 = vsub.f32 %v965, %v972
    %v975 = vmul.f32 %v973, 1.442695
    %v976 = vpow.pop %v975
    %v977 = vmul.f32 %v974, 1.442695
    %v978 = vpow.pop %v977
    %v979 = vsel %vm257, %v976, 0.0
    %980 = vadd.xlane.f32.xlu0 %v979
    %v981 = vpop.xlane.xlu0 %980
    %v982 = vsel %vm257, %v978, 0.0
    %983 = vadd.xlane.f32.xlu0 %v982
    %v984 = vpop.xlane.xlu0 %983
    %v985 = vrcp.pop %v981
    %v986 = vrcp.pop %v984
    %v987 = vmul.f32 %v976, %v985
    %v988 = vmul.f32 %v978, %v986
    %989 = vrot.lane.b32.xlu0 %v925, 64
    %v990 = vpop.permute.xlu0 %989
    %991 = vrot.lane.b32.xlu0 %v928, 64
    %v992 = vpop.permute.xlu0 %991
    %v996 = vsel %vm257, %v987, 0
    %v999 = vsel %vm257, %v988, 0
    %1001 = vmatpush.msra.mxu0 0.0
    %1002 = vmatpush.msra.mxu0 0.0
    %1003 = vmatpush.msra.mxu0 0.0
    %1004 = vmatpush.msra.mxu0 0.0
    %1005 = vmatpush.msra.mxu0 0.0
    %1006 = vmatpush.msra.mxu0 0.0
    %1007 = vmatpush.msra.mxu0 0.0
    %1008 = vmatpush.msra.mxu0 0.0
    %1009 = vmatpush.msra.mxu0 0.0
    %1010 = vmatpush.msra.mxu0 0.0
    %1011 = vmatpush.msra.mxu0 0.0
    %1012 = vmatpush.msra.mxu0 0.0
    %1013 = vmatpush.msra.mxu0 0.0
    %1014 = vmatpush.msra.mxu0 0.0
    %1015 = vmatpush.msra.mxu0 %v992
    %1016 = vmatpush.msra.mxu0 %v990
    %1017 = vmatmul.f32.gmra.mxu0 %v996
    %v1018 = vpop.f32.mrf.mxu0
    %v1019 = vadd.f32 0.0, %v1018
    %1020 = vmatmul.f32.gmra.mxu0 %v999
    %v1021 = vpop.f32.mrf.mxu0
    %v1022 = vadd.f32 0.0, %v1021
    %1023 = vdwg.mxu0
    %1024 = vrot.lane.b32.xlu0 %v925, 120
    %v1025 = vpop.permute.xlu0 %1024
    %1026 = vrot.lane.b32.xlu0 %v928, 120
    %v1027 = vpop.permute.xlu0 %1026
    %1028 = vrot.lane.b32.xlu0 %v925, 88
    %v1029 = vpop.permute.xlu0 %1028
    %1030 = vrot.lane.b32.xlu0 %v928, 88
    %v1031 = vpop.permute.xlu0 %1030
    %v1032 = vsel %vm225, %v1025, 0
    %v1034 = vsel %vm225, %v1027, 0
    %v1036 = vsel %vm225, %v1029, 0
    %v1038 = vsel %vm225, %v1031, 0
    %1040 = vmatpush.xpose.msra.mxu0 0.0
    %1041 = vmatpush.xpose.msra.mxu0 0.0
    %1042 = vmatpush.xpose.msra.mxu0 0.0
    %1043 = vmatpush.xpose.msra.mxu0 0.0
    %1044 = vmatpush.xpose.msra.mxu0 0.0
    %1045 = vmatpush.xpose.msra.mxu0 0.0
    %1046 = vmatpush.xpose.msra.mxu0 0.0
    %1047 = vmatpush.xpose.msra.mxu0 0.0
    %1048 = vmatpush.xpose.msra.mxu0 0.0
    %1049 = vmatpush.xpose.msra.mxu0 0.0
    %1050 = vmatpush.xpose.msra.mxu0 0.0
    %1051 = vmatpush.xpose.msra.mxu0 0.0
    %1052 = vmatpush.xpose.msra.mxu0 0.0
    %1053 = vmatpush.xpose.msra.mxu0 0.0
    %1054 = vmatpush.xpose.msra.mxu0 %v1038
    %1055 = vmatpush.xpose.msra.mxu0 %v1036
    %1056 = vmatmul.f32.gmra.mxu0 %v1032
    %v1057 = vpop.f32.mrf.mxu0
    %v1058 = vadd.f32 %v171, %v1057
    %1059 = vmatmul.f32.gmra.mxu0 %v1034
    %v1060 = vpop.f32.mrf.mxu0
    %v1061 = vadd.f32 %v172, %v1060
    %1062 = vdwg.mxu0
    %v1063 = vsel %vm257, %v1058, -inf
    %1064 = vmax.xlane.f32.xlu0 %v1063
    %v1065 = vpop.xlane.xlu0 %1064
    %v1066 = vsel %vm257, %v1061, -inf
    %1067 = vmax.xlane.f32.xlu0 %v1066
    %v1068 = vpop.xlane.xlu0 %1067
    %v1069 = vsub.f32 %v1058, %v1065
    %v1070 = vsub.f32 %v1061, %v1068
    %v1071 = vmul.f32 %v1069, 1.442695
    %v1072 = vpow.pop %v1071
    %v1073 = vmul.f32 %v1070, 1.442695
    %v1074 = vpow.pop %v1073
    %v1075 = vsel %vm257, %v1072, 0.0
    %1076 = vadd.xlane.f32.xlu0 %v1075
    %v1077 = vpop.xlane.xlu0 %1076
    %v1078 = vsel %vm257, %v1074, 0.0
    %1079 = vadd.xlane.f32.xlu0 %v1078
    %v1080 = vpop.xlane.xlu0 %1079
    %v1081 = vrcp.pop %v1077
    %v1082 = vrcp.pop %v1080
    %v1083 = vmul.f32 %v1072, %v1081
    %v1084 = vmul.f32 %v1074, %v1082
    %1085 = vrot.lane.b32.xlu0 %v925, 56
    %v1086 = vpop.permute.xlu0 %1085
    %1087 = vrot.lane.b32.xlu0 %v928, 56
    %v1088 = vpop.permute.xlu0 %1087
    %v1092 = vsel %vm257, %v1083, 0
    %v1095 = vsel %vm257, %v1084, 0
    %1097 = vmatpush.msra.mxu0 0.0
    %1098 = vmatpush.msra.mxu0 0.0
    %1099 = vmatpush.msra.mxu0 0.0
    %1100 = vmatpush.msra.mxu0 0.0
    %1101 = vmatpush.msra.mxu0 0.0
    %1102 = vmatpush.msra.mxu0 0.0
    %1103 = vmatpush.msra.mxu0 0.0
    %1104 = vmatpush.msra.mxu0 0.0
    %1105 = vmatpush.msra.mxu0 0.0
    %1106 = vmatpush.msra.mxu0 0.0
    %1107 = vmatpush.msra.mxu0 0.0
    %1108 = vmatpush.msra.mxu0 0.0
    %1109 = vmatpush.msra.mxu0 0.0
    %1110 = vmatpush.msra.mxu0 0.0
    %1111 = vmatpush.msra.mxu0 %v1088
    %1112 = vmatpush.msra.mxu0 %v1086
    %1113 = vmatmul.f32.gmra.mxu0 %v1092
    %v1114 = vpop.f32.mrf.mxu0
    %v1115 = vadd.f32 0.0, %v1114
    %1116 = vmatmul.f32.gmra.mxu0 %v1095
    %v1117 = vpop.f32.mrf.mxu0
    %v1118 = vadd.f32 0.0, %v1117
    %1119 = vdwg.mxu0
    %1120 = vrot.lane.b32.xlu0 %v925, 112
    %v1121 = vpop.permute.xlu0 %1120
    %1122 = vrot.lane.b32.xlu0 %v928, 112
    %v1123 = vpop.permute.xlu0 %1122
    %1124 = vrot.lane.b32.xlu0 %v925, 80
    %v1125 = vpop.permute.xlu0 %1124
    %1126 = vrot.lane.b32.xlu0 %v928, 80
    %v1127 = vpop.permute.xlu0 %1126
    %v1128 = vsel %vm225, %v1121, 0
    %v1130 = vsel %vm225, %v1123, 0
    %v1132 = vsel %vm225, %v1125, 0
    %v1134 = vsel %vm225, %v1127, 0
    %1136 = vmatpush.xpose.msra.mxu0 0.0
    %1137 = vmatpush.xpose.msra.mxu0 0.0
    %1138 = vmatpush.xpose.msra.mxu0 0.0
    %1139 = vmatpush.xpose.msra.mxu0 0.0
    %1140 = vmatpush.xpose.msra.mxu0 0.0
    %1141 = vmatpush.xpose.msra.mxu0 0.0
    %1142 = vmatpush.xpose.msra.mxu0 0.0
    %1143 = vmatpush.xpose.msra.mxu0 0.0
    %1144 = vmatpush.xpose.msra.mxu0 0.0
    %1145 = vmatpush.xpose.msra.mxu0 0.0
    %1146 = vmatpush.xpose.msra.mxu0 0.0
    %1147 = vmatpush.xpose.msra.mxu0 0.0
    %1148 = vmatpush.xpose.msra.mxu0 0.0
    %1149 = vmatpush.xpose.msra.mxu0 0.0
    %1150 = vmatpush.xpose.msra.mxu0 %v1134
    %1151 = vmatpush.xpose.msra.mxu0 %v1132
    %1152 = vmatmul.f32.gmra.mxu0 %v1128
    %v1153 = vpop.f32.mrf.mxu0
    %v1154 = vadd.f32 %v171, %v1153
    %1155 = vmatmul.f32.gmra.mxu0 %v1130
    %v1156 = vpop.f32.mrf.mxu0
    %v1157 = vadd.f32 %v172, %v1156
    %1158 = vdwg.mxu0
    %v1159 = vsel %vm257, %v1154, -inf
    %1160 = vmax.xlane.f32.xlu0 %v1159
    %v1161 = vpop.xlane.xlu0 %1160
    %v1162 = vsel %vm257, %v1157, -inf
    %1163 = vmax.xlane.f32.xlu0 %v1162
    %v1164 = vpop.xlane.xlu0 %1163
    %v1165 = vsub.f32 %v1154, %v1161
    %v1166 = vsub.f32 %v1157, %v1164
    %v1167 = vmul.f32 %v1165, 1.442695
    %v1168 = vpow.pop %v1167
    %v1169 = vmul.f32 %v1166, 1.442695
    %v1170 = vpow.pop %v1169
    %v1171 = vsel %vm257, %v1168, 0.0
    %1172 = vadd.xlane.f32.xlu0 %v1171
    %v1173 = vpop.xlane.xlu0 %1172
    %v1174 = vsel %vm257, %v1170, 0.0
    %1175 = vadd.xlane.f32.xlu0 %v1174
    %v1176 = vpop.xlane.xlu0 %1175
    %v1177 = vrcp.pop %v1173
    %v1178 = vrcp.pop %v1176
    %v1179 = vmul.f32 %v1168, %v1177
    %v1180 = vmul.f32 %v1170, %v1178
    %1181 = vrot.lane.b32.xlu0 %v925, 48
    %v1182 = vpop.permute.xlu0 %1181
    %1183 = vrot.lane.b32.xlu0 %v928, 48
    %v1184 = vpop.permute.xlu0 %1183
    %v1188 = vsel %vm257, %v1179, 0
    %v1191 = vsel %vm257, %v1180, 0
    %1193 = vmatpush.msra.mxu0 0.0
    %1194 = vmatpush.msra.mxu0 0.0
    %1195 = vmatpush.msra.mxu0 0.0
    %1196 = vmatpush.msra.mxu0 0.0
    %1197 = vmatpush.msra.mxu0 0.0
    %1198 = vmatpush.msra.mxu0 0.0
    %1199 = vmatpush.msra.mxu0 0.0
    %1200 = vmatpush.msra.mxu0 0.0
    %1201 = vmatpush.msra.mxu0 0.0
    %1202 = vmatpush.msra.mxu0 0.0
    %1203 = vmatpush.msra.mxu0 0.0
    %1204 = vmatpush.msra.mxu0 0.0
    %1205 = vmatpush.msra.mxu0 0.0
    %1206 = vmatpush.msra.mxu0 0.0
    %1207 = vmatpush.msra.mxu0 %v1184
    %1208 = vmatpush.msra.mxu0 %v1182
    %1209 = vmatmul.f32.gmra.mxu0 %v1188
    %v1210 = vpop.f32.mrf.mxu0
    %v1211 = vadd.f32 0.0, %v1210
    %1212 = vmatmul.f32.gmra.mxu0 %v1191
    %v1213 = vpop.f32.mrf.mxu0
    %v1214 = vadd.f32 0.0, %v1213
    %1215 = vdwg.mxu0
    %1216 = vrot.lane.b32.xlu0 %v925, 104
    %v1217 = vpop.permute.xlu0 %1216
    %1218 = vrot.lane.b32.xlu0 %v928, 104
    %v1219 = vpop.permute.xlu0 %1218
    %1220 = vrot.lane.b32.xlu0 %v925, 72
    %v1221 = vpop.permute.xlu0 %1220
    %1222 = vrot.lane.b32.xlu0 %v928, 72
    %v1223 = vpop.permute.xlu0 %1222
    %v1224 = vsel %vm225, %v1217, 0
    %v1226 = vsel %vm225, %v1219, 0
    %v1228 = vsel %vm225, %v1221, 0
    %v1230 = vsel %vm225, %v1223, 0
    %1232 = vmatpush.xpose.msra.mxu0 0.0
    %1233 = vmatpush.xpose.msra.mxu0 0.0
    %1234 = vmatpush.xpose.msra.mxu0 0.0
    %1235 = vmatpush.xpose.msra.mxu0 0.0
    %1236 = vmatpush.xpose.msra.mxu0 0.0
    %1237 = vmatpush.xpose.msra.mxu0 0.0
    %1238 = vmatpush.xpose.msra.mxu0 0.0
    %1239 = vmatpush.xpose.msra.mxu0 0.0
    %1240 = vmatpush.xpose.msra.mxu0 0.0
    %1241 = vmatpush.xpose.msra.mxu0 0.0
    %1242 = vmatpush.xpose.msra.mxu0 0.0
    %1243 = vmatpush.xpose.msra.mxu0 0.0
    %1244 = vmatpush.xpose.msra.mxu0 0.0
    %1245 = vmatpush.xpose.msra.mxu0 0.0
    %1246 = vmatpush.xpose.msra.mxu0 %v1230
    %1247 = vmatpush.xpose.msra.mxu0 %v1228
    %1248 = vmatmul.f32.gmra.mxu0 %v1224
    %v1249 = vpop.f32.mrf.mxu0
    %v1250 = vadd.f32 %v171, %v1249
    %1251 = vmatmul.f32.gmra.mxu0 %v1226
    %v1252 = vpop.f32.mrf.mxu0
    %v1253 = vadd.f32 %v172, %v1252
    %1254 = vdwg.mxu0
    %v1255 = vsel %vm257, %v1250, -inf
    %1256 = vmax.xlane.f32.xlu0 %v1255
    %v1257 = vpop.xlane.xlu0 %1256
    %v1258 = vsel %vm257, %v1253, -inf
    %1259 = vmax.xlane.f32.xlu0 %v1258
    %v1260 = vpop.xlane.xlu0 %1259
    %v1261 = vsub.f32 %v1250, %v1257
    %v1262 = vsub.f32 %v1253, %v1260
    %v1263 = vmul.f32 %v1261, 1.442695
    %v1264 = vpow.pop %v1263
    %v1265 = vmul.f32 %v1262, 1.442695
    %v1266 = vpow.pop %v1265
    %v1267 = vsel %vm257, %v1264, 0.0
    %1268 = vadd.xlane.f32.xlu0 %v1267
    %v1269 = vpop.xlane.xlu0 %1268
    %v1270 = vsel %vm257, %v1266, 0.0
    %1271 = vadd.xlane.f32.xlu0 %v1270
    %v1272 = vpop.xlane.xlu0 %1271
    %v1273 = vrcp.pop %v1269
    %v1274 = vrcp.pop %v1272
    %v1275 = vmul.f32 %v1264, %v1273
    %v1276 = vmul.f32 %v1266, %v1274
    %1277 = vrot.lane.b32.xlu0 %v925, 40
    %v1278 = vpop.permute.xlu0 %1277
    %1279 = vrot.lane.b32.xlu0 %v928, 40
    %v1280 = vpop.permute.xlu0 %1279
    %v1284 = vsel %vm257, %v1275, 0
    %v1287 = vsel %vm257, %v1276, 0
    %1289 = vmatpush.msra.mxu0 0.0
    %1290 = vmatpush.msra.mxu0 0.0
    %1291 = vmatpush.msra.mxu0 0.0
    %1292 = vmatpush.msra.mxu0 0.0
    %1293 = vmatpush.msra.mxu0 0.0
    %1294 = vmatpush.msra.mxu0 0.0
    %1295 = vmatpush.msra.mxu0 0.0
    %1296 = vmatpush.msra.mxu0 0.0
    %1297 = vmatpush.msra.mxu0 0.0
    %1298 = vmatpush.msra.mxu0 0.0
    %1299 = vmatpush.msra.mxu0 0.0
    %1300 = vmatpush.msra.mxu0 0.0
    %1301 = vmatpush.msra.mxu0 0.0
    %1302 = vmatpush.msra.mxu0 0.0
    %1303 = vmatpush.msra.mxu0 %v1280
    %1304 = vmatpush.msra.mxu0 %v1278
    %1305 = vmatmul.f32.gmra.mxu0 %v1284
    %v1306 = vpop.f32.mrf.mxu0
    %v1307 = vadd.f32 0.0, %v1306
    %1308 = vmatmul.f32.gmra.mxu0 %v1287
    %v1309 = vpop.f32.mrf.mxu0
    %v1310 = vadd.f32 0.0, %v1309
    %1311 = vdwg.mxu0
    %1314 = vrot.lane.b32.xlu0 %v1115, 8
    %v1315 = vpop.permute.xlu0 %1314
    %1316 = vrot.lane.b32.xlu0 %v1118, 8
    %v1317 = vpop.permute.xlu0 %1316
    %1322 = vrot.lane.b32.xlu0 %v1211, 16
    %v1323 = vpop.permute.xlu0 %1322
    %1324 = vrot.lane.b32.xlu0 %v1214, 16
    %v1325 = vpop.permute.xlu0 %1324
    %1330 = vrot.lane.b32.xlu0 %v1307, 24
    %v1331 = vpop.permute.xlu0 %1330
    %1332 = vrot.lane.b32.xlu0 %v1310, 24
    %v1333 = vpop.permute.xlu0 %1332
    %v1336 = vsel %vm225, %v1019, %v1315
    %v1337 = vsel %vm225, %v1022, %v1317
    %v1338 = vsel %vm257, %v1336, %v1323
    %v1339 = vsel %vm257, %v1337, %v1325
    %v1340 = vsel %vm631, %v1338, %v1331
    %v1341 = vsel %vm631, %v1339, %v1333
    %v1342 = vperm.slane %v893, 0
    %1347 = vrot.lane.b32.xlu0 %v884, 32
    %v1348 = vpop.permute.xlu0 %1347
    %1349 = vrot.lane.b32.xlu0 %v885, 32
    %v1350 = vpop.permute.xlu0 %1349
    %1351 = vrot.lane.b32.xlu0 %v886, 32
    %v1352 = vpop.permute.xlu0 %1351
    %1353 = vrot.lane.b32.xlu0 %v887, 32
    %v1354 = vpop.permute.xlu0 %1353
    %v1360 = vsel %vm113, %v1340, 0
    %v1363 = vsel %vm113, %v1341, 0
    %1365 = vmatpush.msra.mxu0 0.0
    %1366 = vmatpush.msra.mxu0 0.0
    %1367 = vmatpush.msra.mxu0 0.0
    %1368 = vmatpush.msra.mxu0 0.0
    %1369 = vmatpush.msra.mxu0 0.0
    %1370 = vmatpush.msra.mxu0 0.0
    %1371 = vmatpush.msra.mxu0 0.0
    %1372 = vmatpush.msra.mxu0 0.0
    %1373 = vmatpush.msra.mxu0 0.0
    %1374 = vmatpush.msra.mxu0 0.0
    %1375 = vmatpush.msra.mxu0 0.0
    %1376 = vmatpush.msra.mxu0 0.0
    %1377 = vmatpush.msra.mxu0 %v1354
    %1378 = vmatpush.msra.mxu0 %v1352
    %1379 = vmatpush.msra.mxu0 %v1350
    %1380 = vmatpush.msra.mxu0 %v1348
    %1381 = vmatmul.f32.gmra.mxu0 %v1360
    %v1382 = vpop.f32.mrf.mxu0
    %v1383 = vadd.f32 %v1342, %v1382
    %1384 = vmatmul.f32.gmra.mxu0 %v1363
    %v1385 = vpop.f32.mrf.mxu0
    %v1386 = vadd.f32 %v1342, %v1385
    %1387 = vdwg.mxu0
    %v1388 = vadd.f32 %v1383, %v881
    %v1389 = vadd.f32 %v1386, %v882
    %v1390 = vsel %vm113, %v1388, 0.0
    %1391 = vadd.xlane.f32.xlu0 %v1390
    %v1392 = vpop.xlane.xlu0 %1391
    %v1393 = vsel %vm113, %v1389, 0.0
    %1394 = vadd.xlane.f32.xlu0 %v1393
    %v1395 = vpop.xlane.xlu0 %1394
    %v1396 = vmul.f32 %v1392, %v126
    %v1397 = vmul.f32 %v1395, %v126
    %v1398 = vsub.f32 %v1388, %v1396
    %v1399 = vsub.f32 %v1389, %v1397
    %v1400 = vmul.f32 %v1398, %v1398
    %v1401 = vmul.f32 %v1399, %v1399
    %v1402 = vsel %vm113, %v1400, 0.0
    %1403 = vadd.xlane.f32.xlu0 %v1402
    %v1404 = vpop.xlane.xlu0 %1403
    %v1405 = vsel %vm113, %v1401, 0.0
    %1406 = vadd.xlane.f32.xlu0 %v1405
    %v1407 = vpop.xlane.xlu0 %1406
    %v1408 = vmul.f32 %v1404, %v126
    %v1409 = vmul.f32 %v1407, %v126
    %v1410 = vadd.f32 %v1408, 1e-12
    %v1411 = vadd.f32 %v1409, 1e-12
    %v1412 = vrsqrt.pop %v1410
    %v1413 = vmul.f32 %v1412, %v1410
    %v1414 = vmul.f32 %v1413, %v1412
    %v1415 = vmul.f32 0.5, %v1414
    %v1416 = vsub.f32 1.5, %v1415
    %v1417 = vmul.f32 %v1412, %v1416
    %vm1418 = vweird.f32 %v1410
    %vm1419 = vweird.f32 %v1412
    %vm1420 = vmor %vm1418, %vm1419
    %v1421 = vsel %vm1420, %v1412, %v1417
    %v1422 = vrsqrt.pop %v1411
    %v1423 = vmul.f32 %v1422, %v1411
    %v1424 = vmul.f32 %v1423, %v1422
    %v1425 = vmul.f32 0.5, %v1424
    %v1426 = vsub.f32 1.5, %v1425
    %v1427 = vmul.f32 %v1422, %v1426
    %vm1428 = vweird.f32 %v1411
    %vm1429 = vweird.f32 %v1422
    %vm1430 = vmor %vm1428, %vm1429
    %v1431 = vsel %vm1430, %v1422, %v1427
    %v1432 = vmul.f32 %v1398, %v1421
    %v1433 = vmul.f32 %v1399, %v1431
    %v1434 = vperm.slane %v894, 0
    %v1435 = vmul.f32 %v1432, %v1434
    %v1436 = vmul.f32 %v1433, %v1434
    %v1437 = vperm.slane %v895, 0
    %v1438 = vadd.f32 %v1435, %v1437
    %v1439 = vadd.f32 %v1436, %v1437
    %v1440 = vperm.slane %v896, 0
    %v1442 = vsel %vm113, %v1438, 0
    %v1445 = vsel %vm113, %v1439, 0
    %1447 = vmatpush.msra.mxu0 0.0
    %1448 = vmatpush.msra.mxu0 0.0
    %1449 = vmatpush.msra.mxu0 0.0
    %1450 = vmatpush.msra.mxu0 0.0
    %1451 = vmatpush.msra.mxu0 0.0
    %1452 = vmatpush.msra.mxu0 0.0
    %1453 = vmatpush.msra.mxu0 0.0
    %1454 = vmatpush.msra.mxu0 0.0
    %1455 = vmatpush.msra.mxu0 0.0
    %1456 = vmatpush.msra.mxu0 0.0
    %1457 = vmatpush.msra.mxu0 0.0
    %1458 = vmatpush.msra.mxu0 0.0
    %1459 = vmatpush.msra.mxu0 %v891
    %1460 = vmatpush.msra.mxu0 %v890
    %1461 = vmatpush.msra.mxu0 %v889
    %1462 = vmatpush.msra.mxu0 %v888
    %1463 = vmatmul.f32.gmra.mxu0 %v1442
    %v1464 = vpop.f32.mrf.mxu0
    %v1465 = vadd.f32 %v1440, %v1464
    %1466 = vmatmul.f32.gmra.mxu0 %v1445
    %v1467 = vpop.f32.mrf.mxu0
    %v1468 = vadd.f32 %v1440, %v1467
    %1469 = vdwg.mxu0
    %v1470 = vmul.f32 %v1465, %v1465
    %v1471 = vmul.f32 %v1468, %v1468
    %v1472 = vmul.f32 %v1465, %v1470
    %v1473 = vmul.f32 %v1468, %v1471
    %v1474 = vmul.f32 %v1472, 0.044715
    %v1475 = vmul.f32 %v1473, 0.044715
    %v1476 = vadd.f32 %v1465, %v1474
    %v1477 = vadd.f32 %v1468, %v1475
    %v1478 = vmul.f32 %v1476, 0.7978846
    %v1479 = vmul.f32 %v1477, 0.7978846
    %v1480 = vtanh.pop %v1478
    %v1481 = vtanh.pop %v1479
    %v1482 = vadd.f32 %v1480, 1.0
    %v1483 = vadd.f32 %v1481, 1.0
    %v1484 = vmul.f32 %v1482, 0.5
    %v1485 = vmul.f32 %v1483, 0.5
    %v1486 = vmul.f32 %v1465, %v1484
    %v1487 = vmul.f32 %v1468, %v1485
    %v1488 = vperm.slane %v897, 0
    %1493 = vrot.lane.b32.xlu0 %v888, 64
    %v1494 = vpop.permute.xlu0 %1493
    %1495 = vrot.lane.b32.xlu0 %v889, 64
    %v1496 = vpop.permute.xlu0 %1495
    %1497 = vrot.lane.b32.xlu0 %v890, 64
    %v1498 = vpop.permute.xlu0 %1497
    %1499 = vrot.lane.b32.xlu0 %v891, 64
    %v1500 = vpop.permute.xlu0 %1499
    %v1502 = vsel %vm793, %v1486, 0
    %v1505 = vsel %vm793, %v1487, 0
    %v1507 = vsel %vm793, %v1494, 0
    %v1509 = vsel %vm793, %v1496, 0
    %v1511 = vsel %vm793, %v1498, 0
    %v1513 = vsel %vm793, %v1500, 0
    %1515 = vmatpush.xpose.msra.mxu0 0.0
    %1516 = vmatpush.xpose.msra.mxu0 0.0
    %1517 = vmatpush.xpose.msra.mxu0 0.0
    %1518 = vmatpush.xpose.msra.mxu0 0.0
    %1519 = vmatpush.xpose.msra.mxu0 0.0
    %1520 = vmatpush.xpose.msra.mxu0 0.0
    %1521 = vmatpush.xpose.msra.mxu0 0.0
    %1522 = vmatpush.xpose.msra.mxu0 0.0
    %1523 = vmatpush.xpose.msra.mxu0 0.0
    %1524 = vmatpush.xpose.msra.mxu0 0.0
    %1525 = vmatpush.xpose.msra.mxu0 0.0
    %1526 = vmatpush.xpose.msra.mxu0 0.0
    %1527 = vmatpush.xpose.msra.mxu0 %v1513
    %1528 = vmatpush.xpose.msra.mxu0 %v1511
    %1529 = vmatpush.xpose.msra.mxu0 %v1509
    %1530 = vmatpush.xpose.msra.mxu0 %v1507
    %1531 = vmatmul.f32.gmra.mxu0 %v1502
    %v1532 = vpop.f32.mrf.mxu0
    %v1533 = vadd.f32 %v1488, %v1532
    %1534 = vmatmul.f32.gmra.mxu0 %v1505
    %v1535 = vpop.f32.mrf.mxu0
    %v1536 = vadd.f32 %v1488, %v1535
    %1537 = vdwg.mxu0
    %v1538 = vadd.f32 %v1533, %v1438
    %v1539 = vadd.f32 %v1536, %v1439
    %v1540 = vsel %vm113, %v1538, 0.0
    %1541 = vadd.xlane.f32.xlu0 %v1540
    %v1542 = vpop.xlane.xlu0 %1541
    %v1543 = vsel %vm113, %v1539, 0.0
    %1544 = vadd.xlane.f32.xlu0 %v1543
    %v1545 = vpop.xlane.xlu0 %1544
    %v1546 = vmul.f32 %v1542, %v126
    %v1547 = vmul.f32 %v1545, %v126
    %v1548 = vsub.f32 %v1538, %v1546
    %v1549 = vsub.f32 %v1539, %v1547
    %v1550 = vmul.f32 %v1548, %v1548
    %v1551 = vmul.f32 %v1549, %v1549
    %v1552 = vsel %vm113, %v1550, 0.0
    %1553 = vadd.xlane.f32.xlu0 %v1552
    %v1554 = vpop.xlane.xlu0 %1553
    %v1555 = vsel %vm113, %v1551, 0.0
    %1556 = vadd.xlane.f32.xlu0 %v1555
    %v1557 = vpop.xlane.xlu0 %1556
    %v1558 = vmul.f32 %v1554, %v126
    %v1559 = vmul.f32 %v1557, %v126
    %v1560 = vadd.f32 %v1558, 1e-12
    %v1561 = vadd.f32 %v1559, 1e-12
    %v1562 = vrsqrt.pop %v1560
    %v1563 = vmul.f32 %v1562, %v1560
    %v1564 = vmul.f32 %v1563, %v1562
    %v1565 = vmul.f32 0.5, %v1564
    %v1566 = vsub.f32 1.5, %v1565
    %v1567 = vmul.f32 %v1562, %v1566
    %vm1568 = vweird.f32 %v1560
    %vm1569 = vweird.f32 %v1562
    %vm1570 = vmor %vm1568, %vm1569
    %v1571 = vsel %vm1570, %v1562, %v1567
    %v1572 = vrsqrt.pop %v1561
    %v1573 = vmul.f32 %v1572, %v1561
    %v1574 = vmul.f32 %v1573, %v1572
    %v1575 = vmul.f32 0.5, %v1574
    %v1576 = vsub.f32 1.5, %v1575
    %v1577 = vmul.f32 %v1572, %v1576
    %vm1578 = vweird.f32 %v1561
    %vm1579 = vweird.f32 %v1572
    %vm1580 = vmor %vm1578, %vm1579
    %v1581 = vsel %vm1580, %v1572, %v1577
    %v1582 = vmul.f32 %v1548, %v1571
    %v1583 = vmul.f32 %v1549, %v1581
    %v1584 = vperm.slane %v898, 0
    %v1585 = vmul.f32 %v1582, %v1584
    %v1586 = vmul.f32 %v1583, %v1584
    %v1587 = vperm.slane %v899, 0
    %v1588 = vadd.f32 %v1585, %v1587
    %v1589 = vadd.f32 %v1586, %v1587
    %v1591 = vrot.slane %v1589, 7
    %vm1593 = vcmask 1040384
    %v1594 = vsel %vm1593, %v1588, %v1591
    %vm1595 = vcmask 254976
    %1596 = vst.msk [vmem:[#allocation7] sm:$0x3] %vm1595, %v1594
    // Predicated region
    $region26: #{legal_model_forward.1} parent=1 // pred_check
      _
    $region27: #{legal_model_forward.1} parent=1 // pred_check_branch
      %1598 = sbr.rel (0) target = $region29
    $region28: #{legal_model_forward.1} parent=1 // pred_region
      %1600 = vsyncadd [#allocation4], 0
      %s1602 = sshll.u32 [#allocation7], 4
      %s1603 = int_to_ptr.vmem [resolvable:$true] %s1602
      %s1604 = sshll.u32 %s4, 4
      %s1605 = int_to_ptr.hbm [resolvable:$true] %s1604
      %1607 = dma.vmem_to_hbm [thread:$0]  %s1603, 32, %s1605, [#allocation4]
    $region29: #{legal_model_forward.1} parent=1 // pred_fallthru
      _
    // Predicated region
    $region30: #{legal_model_forward.1} parent=1 // pred_check
      _
    $region31: #{legal_model_forward.1} parent=1 // pred_check_branch
      %1609 = sbr.rel (0) target = $region33
    $region32: #{legal_model_forward.1} parent=1 // pred_region
      %1611 = dma.done [#allocation4], 32
    $region33: #{legal_model_forward.1} parent=1 // pred_fallthru
      _
    %1612 = vsyncpa [#allocation3], 1
    %1613 = vsyncpa [#allocation6], 1
    %1614 = vsyncpa [#allocation4], 1

</llo_original>
